<compile_context>
chip_gen: v5e
topology: v5e:2x2
jax: 0.10.0
libtpu: 0.0.40
codegen_flags: <defaults>
</compile_context>

<pallas_src>
import jax
import jax.numpy as jnp
from jax.experimental import pallas as pl
from jax.experimental.pallas import tpu as pltpu


def _char_decoder_kernel(onehot_ref, table_ref, b_ref, bproj_ref, h0_ref, c0_ref,
                         whh_hbm, wproj_hbm,
                         scores_ref, h_out_ref, c_out_ref,
                         h_all_sc, gates_sc, whh_sc, wproj_sc, dma_sem):
    LB = onehot_ref.shape[0]             # L * B rows (time-major, batch inner)
    B, H = h0_ref.shape
    L = LB // B

    # ---- kick off the big weight DMAs immediately (overlap with compute) ----
    whh_cp = pltpu.make_async_copy(whh_hbm, whh_sc, dma_sem.at[0])
    wproj_cp = pltpu.make_async_copy(wproj_hbm, wproj_sc, dma_sem.at[1])
    whh_cp.start()
    wproj_cp.start()

    # ---- input-to-hidden gates for ALL time steps at once ----
    # one-hot (exact bf16) @ folded (emb @ W_ih) table, f32 accumulate, + bias.
    # Stored in VMEM scratch so it is not held in vregs across the loop.
    gates_sc[...] = (jnp.dot(onehot_ref[...], table_ref[...],
                             preferred_element_type=jnp.float32)
                     + b_ref[...])                                  # (LB, 4H) f32

    whh_cp.wait()                        # W_hh needed from step 0 onward

    # ---- serial LSTM recurrence, fully unrolled (L small & static) ----
    # Gate column order is [i | f | o | g]  (permuted wrapper-side): one wide
    # sigmoid over 3H lanes + one tanh per step on the EUP.
    h = h0_ref[...]                                                  # (B, H) f32
    c = c0_ref[...]                                                  # (B, H) f32
    for t in range(L):
        g = gates_sc[t * B:(t + 1) * B, :] + jnp.dot(
            h.astype(jnp.bfloat16), whh_sc[...],
            preferred_element_type=jnp.float32)                      # (B, 4H) f32
        ifo = jax.nn.sigmoid(g[:, :3 * H])
        g_g = jnp.tanh(g[:, 3 * H:])
        i_g = ifo[:, 0 * H:1 * H]
        f_g = ifo[:, 1 * H:2 * H]
        o_g = ifo[:, 2 * H:3 * H]
        c = f_g * c + i_g * g_g
        h = o_g * jnp.tanh(c)
        h_all_sc[t * B:(t + 1) * B, :] = h                           # stash for projection

    # final hidden state: written exactly once
    h_out_ref[...] = h
    c_out_ref[...] = c

    # ---- batched output projection over all L*B rows (lane-dense slab) ----
    wproj_cp.wait()
    scores_ref[...] = (jnp.dot(h_all_sc[...].astype(jnp.bfloat16), wproj_sc[...],
                               preferred_element_type=jnp.float32)
                       + bproj_ref[...])


def char_decoder_forward(tokens, params, dec_hidden=None):
    """tokens: (length, batch) int32.  Returns (scores (L,B,V), (h (1,B,H), c (1,B,H)))."""
    emb = params["emb"]                 # (Vt, E)   f32, PyTorch layout [i|f|g|o]
    w_ih_t = params["w_ih_t"]           # (E, 4H)
    w_hh_t = params["w_hh_t"]           # (H, 4H)
    b_gates = params["b_gates"]         # (1, 4H)   = b_ih + b_hh
    w_proj_t = params["w_proj_t"]       # (H, V)
    b_proj = params["b_proj"]           # (1, V)

    L, B = tokens.shape
    Vt, E = emb.shape
    H = w_hh_t.shape[0]
    V = w_proj_t.shape[1]
    LB = L * B

    # Lane/sublane alignment assumptions the kernel relies on (otherwise the
    # result is still correct but uses masked/rotated partial ops).
    assert H % 128 == 0 and V % 128 == 0 and Vt % 128 == 0
    assert B % 8 == 0 and LB % 8 == 0

    # ---- static param prep (constant-folds under jit; hoist for repeated
    #      decode steps): fold emb@W_ih, permute gates [i,f,g,o]->[i,f,o,g],
    #      cast MXU operands to bf16. ----
    def permute_gates(w):
        return jnp.concatenate(
            [w[..., 0 * H:2 * H], w[..., 3 * H:4 * H], w[..., 2 * H:3 * H]], axis=-1)

    table_b16 = permute_gates(emb @ w_ih_t).astype(jnp.bfloat16)     # (Vt, 4H)
    whh_b16 = permute_gates(w_hh_t).astype(jnp.bfloat16)             # (H, 4H)
    b_perm = permute_gates(b_gates)                                  # (1, 4H) f32
    wproj_b16 = w_proj_t.astype(jnp.bfloat16)                        # (H, V)

    if dec_hidden is None:
        h0 = jnp.zeros((B, H), jnp.float32)
        c0 = jnp.zeros((B, H), jnp.float32)
    else:
        h0 = dec_hidden[0].reshape(B, H)
        c0 = dec_hidden[1].reshape(B, H)

    # Pre-one-hot tokens (exact in bf16): lane-dense (LB, Vt) slab, time-major.
    tok_flat = tokens.reshape(LB).astype(jnp.int32)
    onehot = (tok_flat[:, None] ==
              jnp.arange(Vt, dtype=jnp.int32)[None, :]).astype(jnp.bfloat16)

    # advisory cost estimate (kernel is tiny / latency-bound)
    flops = (2 * LB * Vt * 4 * H      # fused gather+input-to-hidden matmul
             + 2 * LB * H * 4 * H     # recurrent h @ W_hh over L steps
             + 2 * LB * H * V)        # output projection
    transcendentals = 5 * LB * H
    bytes_accessed = (2 * (onehot.size + table_b16.size + whh_b16.size + wproj_b16.size)
                      + 4 * (b_perm.size + b_proj.size + 2 * B * H    # h0, c0
                             + LB * V + 2 * B * H))                   # scores, h_T, c_T

    grid_spec = pltpu.PrefetchScalarGridSpec(
        num_scalar_prefetch=0,
        grid=(1,),                                              # single invocation
        in_specs=[
            pl.BlockSpec((LB, Vt), lambda i: (0, 0)),           # one-hot tokens (bf16)
            pl.BlockSpec((Vt, 4 * H), lambda i: (0, 0)),        # folded emb@W_ih (bf16)
            pl.BlockSpec((1, 4 * H), lambda i: (0, 0)),         # gate bias (f32)
            pl.BlockSpec((1, V), lambda i: (0, 0)),             # proj bias (f32)
            pl.BlockSpec((B, H), lambda i: (0, 0)),             # h0
            pl.BlockSpec((B, H), lambda i: (0, 0)),             # c0
            pl.BlockSpec(memory_space=pl.ANY),                  # W_hh  (HBM, manual DMA)
            pl.BlockSpec(memory_space=pl.ANY),                  # W_proj(HBM, manual DMA)
        ],
        out_specs=[
            pl.BlockSpec((LB, V), lambda i: (0, 0)),            # scores slab
            pl.BlockSpec((B, H), lambda i: (0, 0)),             # final h
            pl.BlockSpec((B, H), lambda i: (0, 0)),             # final c
        ],
        scratch_shapes=[
            pltpu.VMEM((LB, H), jnp.float32),                   # all h_t for projection
            pltpu.VMEM((LB, 4 * H), jnp.float32),               # input gates slab
            pltpu.VMEM((H, 4 * H), jnp.bfloat16),               # W_hh landing buffer
            pltpu.VMEM((H, V), jnp.bfloat16),                   # W_proj landing buffer
            pltpu.SemaphoreType.DMA((2,)),                      # DMA completion sems
        ],
    )

    scores_flat, h_T, c_T = pl.pallas_call(
        _char_decoder_kernel,
        out_shape=(
            jax.ShapeDtypeStruct((LB, V), jnp.float32),
            jax.ShapeDtypeStruct((B, H), jnp.float32),
            jax.ShapeDtypeStruct((B, H), jnp.float32),
        ),
        grid_spec=grid_spec,
        compiler_params=pltpu.CompilerParams(
            dimension_semantics=("arbitrary",)),
        cost_estimate=pl.CostEstimate(flops=flops,
                                      transcendentals=transcendentals,
                                      bytes_accessed=bytes_accessed),
    )(onehot, table_b16, b_perm, b_proj, h0, c0, whh_b16, wproj_b16)

    scores = scores_flat.reshape(L, B, V)
    return scores, (h_T.reshape(1, B, H), c_T.reshape(1, B, H))


def _ref_forward(tokens, params, dec_hidden):
    """Pure-JAX f32 reference (mirrors nn.Embedding -> nn.LSTM -> nn.Linear)."""
    emb, w_ih_t, w_hh_t, b_gates, w_proj_t, b_proj = (
        params["emb"], params["w_ih_t"], params["w_hh_t"],
        params["b_gates"], params["w_proj_t"], params["b_proj"])
    H = w_hh_t.shape[0]
    x = jnp.take(emb, tokens, axis=0)                 # (L, B, E)
    h0, c0 = dec_hidden[0][0], dec_hidden[1][0]

    def step(carry, x_t):
        h, c = carry
        gates = x_t @ w_ih_t + h @ w_hh_t + b_gates[0]     # PyTorch order [i|f|g|o]
        i = jax.nn.sigmoid(gates[:, 0 * H:1 * H])
        f = jax.nn.sigmoid(gates[:, 1 * H:2 * H])
        g = jnp.tanh(gates[:, 2 * H:3 * H])
        o = jax.nn.sigmoid(gates[:, 3 * H:4 * H])
        c = f * c + i * g
        h = o * jnp.tanh(c)
        return (h, c), h

    (hT, cT), hs = jax.lax.scan(step, (h0, c0), x)
    scores = hs @ w_proj_t + b_proj[0]
    return scores, (hT[None], cT[None])


def make_params(key, vocab_size, char_emb_size, hidden_size, pad_idx=0):
    """PyTorch-layout parameters (gate order [i|f|g|o], combined LSTM biases)."""
    ks = jax.random.split(key, 7)
    scale = 0.1
    emb = scale * jax.random.normal(ks[0], (vocab_size, char_emb_size), jnp.float32)
    emb = emb.at[pad_idx].set(0.0)                    # padding_idx row is zero
    w_ih = scale * jax.random.normal(ks[1], (4 * hidden_size, char_emb_size), jnp.float32)
    w_hh = scale * jax.random.normal(ks[2], (4 * hidden_size, hidden_size), jnp.float32)
    b_ih = scale * jax.random.normal(ks[3], (4 * hidden_size,), jnp.float32)
    b_hh = scale * jax.random.normal(ks[4], (4 * hidden_size,), jnp.float32)
    w_proj = scale * jax.random.normal(ks[5], (vocab_size, hidden_size), jnp.float32)
    b_proj = scale * jax.random.normal(ks[6], (vocab_size,), jnp.float32)
    return {
        "emb": emb,
        "w_ih_t": w_ih.T,                             # (E, 4H)
        "w_hh_t": w_hh.T,                             # (H, 4H)
        "b_gates": (b_ih + b_hh)[None, :],            # (1, 4H)
        "w_proj_t": w_proj.T,                         # (H, V)
        "b_proj": b_proj[None, :],                    # (1, V)
    }


if __name__ == "__main__":
    # Small, TPU-friendly sizes consistent with the module's __init__:
    #   hidden_size=128, char_embedding_size=64, len(char2id)=128
    L, B, E, H, V = 6, 8, 64, 128, 128
    key = jax.random.PRNGKey(0)
    k_tok, k_p, k_h, k_c = jax.random.split(key, 4)

    params = make_params(k_p, vocab_size=V, char_emb_size=E, hidden_size=H, pad_idx=0)
    tokens = jax.random.randint(k_tok, (L, B), 0, V, dtype=jnp.int32)    # (length, batch)
    dec_hidden = (0.1 * jax.random.normal(k_h, (1, B, H), jnp.float32),
                  0.1 * jax.random.normal(k_c, (1, B, H), jnp.float32))

    scores, (h_T, c_T) = char_decoder_forward(tokens, params, dec_hidden)
    jax.block_until_ready((scores, h_T, c_T))

    # Check against pure-JAX f32 reference of the PyTorch semantics.
    # bf16 MXU operands => tolerance relaxed from 1e-4 to 2e-2 (per review).
    ref_scores, (ref_h, ref_c) = _ref_forward(tokens, params, dec_hidden)
    assert scores.shape == (L, B, V) and h_T.shape == (1, B, H) and c_T.shape == (1, B, H)
    assert jnp.allclose(scores, ref_scores, atol=2e-2, rtol=2e-2)
    assert jnp.allclose(h_T, ref_h, atol=2e-2, rtol=2e-2)
    assert jnp.allclose(c_T, ref_c, atol=2e-2, rtol=2e-2)

    print("KERNEL_OK")
</pallas_src>

<mosaic_0001>
module attributes {stable_mosaic.version = 11 : i64} {
  func.func @_char_decoder_kernel(%arg0: i32, %arg1: memref<48x128xbf16, #tpu.memory_space<vmem>>, %arg2: memref<128x512xbf16, #tpu.memory_space<vmem>>, %arg3: memref<1x512xf32, #tpu.memory_space<vmem>>, %arg4: memref<1x128xf32, #tpu.memory_space<vmem>>, %arg5: memref<8x128xf32, #tpu.memory_space<vmem>>, %arg6: memref<8x128xf32, #tpu.memory_space<vmem>>, %arg7: memref<128x512xbf16, #tpu.memory_space<any>>, %arg8: memref<128x128xbf16, #tpu.memory_space<any>>, %arg9: memref<48x128xf32, #tpu.memory_space<vmem>>, %arg10: memref<8x128xf32, #tpu.memory_space<vmem>>, %arg11: memref<8x128xf32, #tpu.memory_space<vmem>>, %arg12: memref<48x128xf32, #tpu.memory_space<vmem>>, %arg13: memref<48x512xf32, #tpu.memory_space<vmem>>, %arg14: memref<128x512xbf16, #tpu.memory_space<vmem>>, %arg15: memref<128x128xbf16, #tpu.memory_space<vmem>>, %arg16: memref<2x!tpu.dma_semaphore, #tpu.memory_space<semaphore_mem>>) attributes {dimension_semantics = [#tpu.dimension_semantics<arbitrary>], iteration_bounds = array<i64: 1>, scalar_prefetch = 0 : i64, scratch_operands = 5 : i64, tpu.core_type = #tpu.core_type<tc>, window_params = [{pipeline_mode = #tpu.pipeline_mode<synchronous>, transform_indices = @transform_0, window_bounds = array<i64: 48, 128>}, {pipeline_mode = #tpu.pipeline_mode<synchronous>, transform_indices = @transform_1, window_bounds = array<i64: 128, 512>}, {pipeline_mode = #tpu.pipeline_mode<synchronous>, transform_indices = @transform_2, window_bounds = array<i64: 1, 512>}, {pipeline_mode = #tpu.pipeline_mode<synchronous>, transform_indices = @transform_3, window_bounds = array<i64: 1, 128>}, {pipeline_mode = #tpu.pipeline_mode<synchronous>, transform_indices = @transform_4, window_bounds = array<i64: 8, 128>}, {pipeline_mode = #tpu.pipeline_mode<synchronous>, transform_indices = @transform_5, window_bounds = array<i64: 8, 128>}, {}, {}, {pipeline_mode = #tpu.pipeline_mode<synchronous>, transform_indices = @transform_8, window_bounds = array<i64: 48, 128>}, {pipeline_mode = #tpu.pipeline_mode<synchronous>, transform_indices = @transform_9, window_bounds = array<i64: 8, 128>}, {pipeline_mode = #tpu.pipeline_mode<synchronous>, transform_indices = @transform_10, window_bounds = array<i64: 8, 128>}]} {
    %c0_i32 = arith.constant 0 : i32
    %0 = tpu.memref_slice %arg16[%c0_i32] : memref<2x!tpu.dma_semaphore, #tpu.memory_space<semaphore_mem>> -> memref<1x!tpu.dma_semaphore, #tpu.memory_space<semaphore_mem>>
    %1 = tpu.memref_squeeze %0 : memref<1x!tpu.dma_semaphore, #tpu.memory_space<semaphore_mem>> -> memref<!tpu.dma_semaphore, #tpu.memory_space<semaphore_mem>>
    tpu.enqueue_dma source(%arg7 : memref<128x512xbf16, #tpu.memory_space<any>>) target(%arg14 : memref<128x512xbf16, #tpu.memory_space<vmem>>) target_semaphore(%1 : memref<!tpu.dma_semaphore, #tpu.memory_space<semaphore_mem>>)
    %c1_i32 = arith.constant 1 : i32
    %2 = tpu.memref_slice %arg16[%c1_i32] : memref<2x!tpu.dma_semaphore, #tpu.memory_space<semaphore_mem>> -> memref<1x!tpu.dma_semaphore, #tpu.memory_space<semaphore_mem>>
    %3 = tpu.memref_squeeze %2 : memref<1x!tpu.dma_semaphore, #tpu.memory_space<semaphore_mem>> -> memref<!tpu.dma_semaphore, #tpu.memory_space<semaphore_mem>>
    tpu.enqueue_dma source(%arg8 : memref<128x128xbf16, #tpu.memory_space<any>>) target(%arg15 : memref<128x128xbf16, #tpu.memory_space<vmem>>) target_semaphore(%3 : memref<!tpu.dma_semaphore, #tpu.memory_space<semaphore_mem>>)
    %c0 = arith.constant 0 : index
    %c0_0 = arith.constant 0 : index
    %4 = vector.load %arg1[%c0, %c0_0] : memref<48x128xbf16, #tpu.memory_space<vmem>>, vector<48x128xbf16>
    %c0_1 = arith.constant 0 : index
    %c0_2 = arith.constant 0 : index
    %5 = vector.load %arg2[%c0_1, %c0_2] : memref<128x512xbf16, #tpu.memory_space<vmem>>, vector<128x512xbf16>
    %cst = arith.constant dense<0.000000e+00> : vector<48x512xf32>
    %6 = tpu.matmul %4, %5, %cst {dimension_numbers = #tpu.dot_dimension_numbers<[1], [0], [0], [1], [0, 0, 1, 1], [], []>} : vector<48x128xbf16>, vector<128x512xbf16>, vector<48x512xf32> -> vector<48x512xf32>
    %c0_3 = arith.constant 0 : index
    %c0_4 = arith.constant 0 : index
    %7 = vector.load %arg3[%c0_3, %c0_4] : memref<1x512xf32, #tpu.memory_space<vmem>>, vector<1x512xf32>
    %8 = vector.broadcast %7 : vector<1x512xf32> to vector<48x512xf32>
    %9 = arith.addf %6, %8 : vector<48x512xf32>
    %c0_5 = arith.constant 0 : index
    %c0_6 = arith.constant 0 : index
    %10 = vector.load %arg13[%c0_5, %c0_6] : memref<48x512xf32, #tpu.memory_space<vmem>>, vector<48x512xf32>
    tpu.vector_store %arg13[%c0_5, %c0_6], %9 {strides = array<i32>} : memref<48x512xf32, #tpu.memory_space<vmem>>, vector<48x512xf32>,
    %c0_i32_7 = arith.constant 0 : i32
    %11 = tpu.memref_slice %arg16[%c0_i32_7] : memref<2x!tpu.dma_semaphore, #tpu.memory_space<semaphore_mem>> -> memref<1x!tpu.dma_semaphore, #tpu.memory_space<semaphore_mem>>
    %12 = tpu.memref_squeeze %11 : memref<1x!tpu.dma_semaphore, #tpu.memory_space<semaphore_mem>> -> memref<!tpu.dma_semaphore, #tpu.memory_space<semaphore_mem>>
    tpu.wait_dma2 semaphore(%12 : memref<!tpu.dma_semaphore, #tpu.memory_space<semaphore_mem>>) src(%arg7 : memref<128x512xbf16, #tpu.memory_space<any>>) dst(%arg14 : memref<128x512xbf16, #tpu.memory_space<vmem>>)
    %c0_8 = arith.constant 0 : index
    %c0_9 = arith.constant 0 : index
    %13 = vector.load %arg5[%c0_8, %c0_9] : memref<8x128xf32, #tpu.memory_space<vmem>>, vector<8x128xf32>
    %c0_10 = arith.constant 0 : index
    %c0_11 = arith.constant 0 : index
    %14 = vector.load %arg6[%c0_10, %c0_11] : memref<8x128xf32, #tpu.memory_space<vmem>>, vector<8x128xf32>
    %c0_12 = arith.constant 0 : index
    %c0_13 = arith.constant 0 : index
    %15 = vector.load %arg13[%c0_12, %c0_13] : memref<48x512xf32, #tpu.memory_space<vmem>>, vector<8x512xf32>
    %16 = arith.truncf %13 : vector<8x128xf32> to vector<8x128xbf16>
    %c0_14 = arith.constant 0 : index
    %c0_15 = arith.constant 0 : index
    %17 = vector.load %arg14[%c0_14, %c0_15] : memref<128x512xbf16, #tpu.memory_space<vmem>>, vector<128x512xbf16>
    %cst_16 = arith.constant dense<0.000000e+00> : vector<8x512xf32>
    %18 = tpu.matmul %16, %17, %cst_16 {dimension_numbers = #tpu.dot_dimension_numbers<[1], [0], [0], [1], [0, 0, 1, 1], [], []>} : vector<8x128xbf16>, vector<128x512xbf16>, vector<8x512xf32> -> vector<8x512xf32>
    %19 = arith.addf %15, %18 : vector<8x512xf32>
    %20 = vector.extract_strided_slice %19 {offsets = [0, 0], sizes = [8, 384], strides = [1, 1]} : vector<8x512xf32> to vector<8x384xf32>
    %21 = arith.negf %20 : vector<8x384xf32>
    %22 = math.exp %21 : vector<8x384xf32>
    %cst_17 = arith.constant 1.000000e+00 : f32
    %23 = vector.broadcast %cst_17 : f32 to vector<8x384xf32>
    %24 = arith.addf %23, %22 : vector<8x384xf32>
    %25 = arith.divf %23, %24 : vector<8x384xf32>
    %26 = vector.extract_strided_slice %19 {offsets = [0, 384], sizes = [8, 128], strides = [1, 1]} : vector<8x512xf32> to vector<8x128xf32>
    %27 = math.tanh %26 : vector<8x128xf32>
    %28 = vector.extract_strided_slice %25 {offsets = [0, 0], sizes = [8, 128], strides = [1, 1]} : vector<8x384xf32> to vector<8x128xf32>
    %29 = vector.extract_strided_slice %25 {offsets = [0, 128], sizes = [8, 128], strides = [1, 1]} : vector<8x384xf32> to vector<8x128xf32>
    %30 = vector.extract_strided_slice %25 {offsets = [0, 256], sizes = [8, 128], strides = [1, 1]} : vector<8x384xf32> to vector<8x128xf32>
    %31 = arith.mulf %29, %14 : vector<8x128xf32>
    %32 = arith.mulf %28, %27 : vector<8x128xf32>
    %33 = arith.addf %31, %32 : vector<8x128xf32>
    %34 = math.tanh %33 : vector<8x128xf32>
    %35 = arith.mulf %30, %34 : vector<8x128xf32>
    %c0_18 = arith.constant 0 : index
    %c0_19 = arith.constant 0 : index
    %36 = vector.load %arg12[%c0_18, %c0_19] : memref<48x128xf32, #tpu.memory_space<vmem>>, vector<8x128xf32>
    tpu.vector_store %arg12[%c0_18, %c0_19], %35 {strides = array<i32>} : memref<48x128xf32, #tpu.memory_space<vmem>>, vector<8x128xf32>,
    %c8 = arith.constant 8 : index
    %c0_20 = arith.constant 0 : index
    %37 = vector.load %arg13[%c8, %c0_20] : memref<48x512xf32, #tpu.memory_space<vmem>>, vector<8x512xf32>
    %38 = arith.truncf %35 : vector<8x128xf32> to vector<8x128xbf16>
    %c0_21 = arith.constant 0 : index
    %c0_22 = arith.constant 0 : index
    %39 = vector.load %arg14[%c0_21, %c0_22] : memref<128x512xbf16, #tpu.memory_space<vmem>>, vector<128x512xbf16>
    %cst_23 = arith.constant dense<0.000000e+00> : vector<8x512xf32>
    %40 = tpu.matmul %38, %39, %cst_23 {dimension_numbers = #tpu.dot_dimension_numbers<[1], [0], [0], [1], [0, 0, 1, 1], [], []>} : vector<8x128xbf16>, vector<128x512xbf16>, vector<8x512xf32> -> vector<8x512xf32>
    %41 = arith.addf %37, %40 : vector<8x512xf32>
    %42 = vector.extract_strided_slice %41 {offsets = [0, 0], sizes = [8, 384], strides = [1, 1]} : vector<8x512xf32> to vector<8x384xf32>
    %43 = arith.negf %42 : vector<8x384xf32>
    %44 = math.exp %43 : vector<8x384xf32>
    %cst_24 = arith.constant 1.000000e+00 : f32
    %45 = vector.broadcast %cst_24 : f32 to vector<8x384xf32>
    %46 = arith.addf %45, %44 : vector<8x384xf32>
    %47 = arith.divf %45, %46 : vector<8x384xf32>
    %48 = vector.extract_strided_slice %41 {offsets = [0, 384], sizes = [8, 128], strides = [1, 1]} : vector<8x512xf32> to vector<8x128xf32>
    %49 = math.tanh %48 : vector<8x128xf32>
    %50 = vector.extract_strided_slice %47 {offsets = [0, 0], sizes = [8, 128], strides = [1, 1]} : vector<8x384xf32> to vector<8x128xf32>
    %51 = vector.extract_strided_slice %47 {offsets = [0, 128], sizes = [8, 128], strides = [1, 1]} : vector<8x384xf32> to vector<8x128xf32>
    %52 = vector.extract_strided_slice %47 {offsets = [0, 256], sizes = [8, 128], strides = [1, 1]} : vector<8x384xf32> to vector<8x128xf32>
    %53 = arith.mulf %51, %33 : vector<8x128xf32>
    %54 = arith.mulf %50, %49 : vector<8x128xf32>
    %55 = arith.addf %53, %54 : vector<8x128xf32>
    %56 = math.tanh %55 : vector<8x128xf32>
    %57 = arith.mulf %52, %56 : vector<8x128xf32>
    %c8_25 = arith.constant 8 : index
    %c0_26 = arith.constant 0 : index
    %58 = vector.load %arg12[%c8_25, %c0_26] : memref<48x128xf32, #tpu.memory_space<vmem>>, vector<8x128xf32>
    tpu.vector_store %arg12[%c8_25, %c0_26], %57 {strides = array<i32>} : memref<48x128xf32, #tpu.memory_space<vmem>>, vector<8x128xf32>,
    %c16 = arith.constant 16 : index
    %c0_27 = arith.constant 0 : index
    %59 = vector.load %arg13[%c16, %c0_27] : memref<48x512xf32, #tpu.memory_space<vmem>>, vector<8x512xf32>
    %60 = arith.truncf %57 : vector<8x128xf32> to vector<8x128xbf16>
    %c0_28 = arith.constant 0 : index
    %c0_29 = arith.constant 0 : index
    %61 = vector.load %arg14[%c0_28, %c0_29] : memref<128x512xbf16, #tpu.memory_space<vmem>>, vector<128x512xbf16>
    %cst_30 = arith.constant dense<0.000000e+00> : vector<8x512xf32>
    %62 = tpu.matmul %60, %61, %cst_30 {dimension_numbers = #tpu.dot_dimension_numbers<[1], [0], [0], [1], [0, 0, 1, 1], [], []>} : vector<8x128xbf16>, vector<128x512xbf16>, vector<8x512xf32> -> vector<8x512xf32>
    %63 = arith.addf %59, %62 : vector<8x512xf32>
    %64 = vector.extract_strided_slice %63 {offsets = [0, 0], sizes = [8, 384], strides = [1, 1]} : vector<8x512xf32> to vector<8x384xf32>
    %65 = arith.negf %64 : vector<8x384xf32>
    %66 = math.exp %65 : vector<8x384xf32>
    %cst_31 = arith.constant 1.000000e+00 : f32
    %67 = vector.broadcast %cst_31 : f32 to vector<8x384xf32>
    %68 = arith.addf %67, %66 : vector<8x384xf32>
    %69 = arith.divf %67, %68 : vector<8x384xf32>
    %70 = vector.extract_strided_slice %63 {offsets = [0, 384], sizes = [8, 128], strides = [1, 1]} : vector<8x512xf32> to vector<8x128xf32>
    %71 = math.tanh %70 : vector<8x128xf32>
    %72 = vector.extract_strided_slice %69 {offsets = [0, 0], sizes = [8, 128], strides = [1, 1]} : vector<8x384xf32> to vector<8x128xf32>
    %73 = vector.extract_strided_slice %69 {offsets = [0, 128], sizes = [8, 128], strides = [1, 1]} : vector<8x384xf32> to vector<8x128xf32>
    %74 = vector.extract_strided_slice %69 {offsets = [0, 256], sizes = [8, 128], strides = [1, 1]} : vector<8x384xf32> to vector<8x128xf32>
    %75 = arith.mulf %73, %55 : vector<8x128xf32>
    %76 = arith.mulf %72, %71 : vector<8x128xf32>
    %77 = arith.addf %75, %76 : vector<8x128xf32>
    %78 = math.tanh %77 : vector<8x128xf32>
    %79 = arith.mulf %74, %78 : vector<8x128xf32>
    %c16_32 = arith.constant 16 : index
    %c0_33 = arith.constant 0 : index
    %80 = vector.load %arg12[%c16_32, %c0_33] : memref<48x128xf32, #tpu.memory_space<vmem>>, vector<8x128xf32>
    tpu.vector_store %arg12[%c16_32, %c0_33], %79 {strides = array<i32>} : memref<48x128xf32, #tpu.memory_space<vmem>>, vector<8x128xf32>,
    %c24 = arith.constant 24 : index
    %c0_34 = arith.constant 0 : index
    %81 = vector.load %arg13[%c24, %c0_34] : memref<48x512xf32, #tpu.memory_space<vmem>>, vector<8x512xf32>
    %82 = arith.truncf %79 : vector<8x128xf32> to vector<8x128xbf16>
    %c0_35 = arith.constant 0 : index
    %c0_36 = arith.constant 0 : index
    %83 = vector.load %arg14[%c0_35, %c0_36] : memref<128x512xbf16, #tpu.memory_space<vmem>>, vector<128x512xbf16>
    %cst_37 = arith.constant dense<0.000000e+00> : vector<8x512xf32>
    %84 = tpu.matmul %82, %83, %cst_37 {dimension_numbers = #tpu.dot_dimension_numbers<[1], [0], [0], [1], [0, 0, 1, 1], [], []>} : vector<8x128xbf16>, vector<128x512xbf16>, vector<8x512xf32> -> vector<8x512xf32>
    %85 = arith.addf %81, %84 : vector<8x512xf32>
    %86 = vector.extract_strided_slice %85 {offsets = [0, 0], sizes = [8, 384], strides = [1, 1]} : vector<8x512xf32> to vector<8x384xf32>
    %87 = arith.negf %86 : vector<8x384xf32>
    %88 = math.exp %87 : vector<8x384xf32>
    %cst_38 = arith.constant 1.000000e+00 : f32
    %89 = vector.broadcast %cst_38 : f32 to vector<8x384xf32>
    %90 = arith.addf %89, %88 : vector<8x384xf32>
    %91 = arith.divf %89, %90 : vector<8x384xf32>
    %92 = vector.extract_strided_slice %85 {offsets = [0, 384], sizes = [8, 128], strides = [1, 1]} : vector<8x512xf32> to vector<8x128xf32>
    %93 = math.tanh %92 : vector<8x128xf32>
    %94 = vector.extract_strided_slice %91 {offsets = [0, 0], sizes = [8, 128], strides = [1, 1]} : vector<8x384xf32> to vector<8x128xf32>
    %95 = vector.extract_strided_slice %91 {offsets = [0, 128], sizes = [8, 128], strides = [1, 1]} : vector<8x384xf32> to vector<8x128xf32>
    %96 = vector.extract_strided_slice %91 {offsets = [0, 256], sizes = [8, 128], strides = [1, 1]} : vector<8x384xf32> to vector<8x128xf32>
    %97 = arith.mulf %95, %77 : vector<8x128xf32>
    %98 = arith.mulf %94, %93 : vector<8x128xf32>
    %99 = arith.addf %97, %98 : vector<8x128xf32>
    %100 = math.tanh %99 : vector<8x128xf32>
    %101 = arith.mulf %96, %100 : vector<8x128xf32>
    %c24_39 = arith.constant 24 : index
    %c0_40 = arith.constant 0 : index
    %102 = vector.load %arg12[%c24_39, %c0_40] : memref<48x128xf32, #tpu.memory_space<vmem>>, vector<8x128xf32>
    tpu.vector_store %arg12[%c24_39, %c0_40], %101 {strides = array<i32>} : memref<48x128xf32, #tpu.memory_space<vmem>>, vector<8x128xf32>,
    %c32 = arith.constant 32 : index
    %c0_41 = arith.constant 0 : index
    %103 = vector.load %arg13[%c32, %c0_41] : memref<48x512xf32, #tpu.memory_space<vmem>>, vector<8x512xf32>
    %104 = arith.truncf %101 : vector<8x128xf32> to vector<8x128xbf16>
    %c0_42 = arith.constant 0 : index
    %c0_43 = arith.constant 0 : index
    %105 = vector.load %arg14[%c0_42, %c0_43] : memref<128x512xbf16, #tpu.memory_space<vmem>>, vector<128x512xbf16>
    %cst_44 = arith.constant dense<0.000000e+00> : vector<8x512xf32>
    %106 = tpu.matmul %104, %105, %cst_44 {dimension_numbers = #tpu.dot_dimension_numbers<[1], [0], [0], [1], [0, 0, 1, 1], [], []>} : vector<8x128xbf16>, vector<128x512xbf16>, vector<8x512xf32> -> vector<8x512xf32>
    %107 = arith.addf %103, %106 : vector<8x512xf32>
    %108 = vector.extract_strided_slice %107 {offsets = [0, 0], sizes = [8, 384], strides = [1, 1]} : vector<8x512xf32> to vector<8x384xf32>
    %109 = arith.negf %108 : vector<8x384xf32>
    %110 = math.exp %109 : vector<8x384xf32>
    %cst_45 = arith.constant 1.000000e+00 : f32
    %111 = vector.broadcast %cst_45 : f32 to vector<8x384xf32>
    %112 = arith.addf %111, %110 : vector<8x384xf32>
    %113 = arith.divf %111, %112 : vector<8x384xf32>
    %114 = vector.extract_strided_slice %107 {offsets = [0, 384], sizes = [8, 128], strides = [1, 1]} : vector<8x512xf32> to vector<8x128xf32>
    %115 = math.tanh %114 : vector<8x128xf32>
    %116 = vector.extract_strided_slice %113 {offsets = [0, 0], sizes = [8, 128], strides = [1, 1]} : vector<8x384xf32> to vector<8x128xf32>
    %117 = vector.extract_strided_slice %113 {offsets = [0, 128], sizes = [8, 128], strides = [1, 1]} : vector<8x384xf32> to vector<8x128xf32>
    %118 = vector.extract_strided_slice %113 {offsets = [0, 256], sizes = [8, 128], strides = [1, 1]} : vector<8x384xf32> to vector<8x128xf32>
    %119 = arith.mulf %117, %99 : vector<8x128xf32>
    %120 = arith.mulf %116, %115 : vector<8x128xf32>
    %121 = arith.addf %119, %120 : vector<8x128xf32>
    %122 = math.tanh %121 : vector<8x128xf32>
    %123 = arith.mulf %118, %122 : vector<8x128xf32>
    %c32_46 = arith.constant 32 : index
    %c0_47 = arith.constant 0 : index
    %124 = vector.load %arg12[%c32_46, %c0_47] : memref<48x128xf32, #tpu.memory_space<vmem>>, vector<8x128xf32>
    tpu.vector_store %arg12[%c32_46, %c0_47], %123 {strides = array<i32>} : memref<48x128xf32, #tpu.memory_space<vmem>>, vector<8x128xf32>,
    %c40 = arith.constant 40 : index
    %c0_48 = arith.constant 0 : index
    %125 = vector.load %arg13[%c40, %c0_48] : memref<48x512xf32, #tpu.memory_space<vmem>>, vector<8x512xf32>
    %126 = arith.truncf %123 : vector<8x128xf32> to vector<8x128xbf16>
    %c0_49 = arith.constant 0 : index
    %c0_50 = arith.constant 0 : index
    %127 = vector.load %arg14[%c0_49, %c0_50] : memref<128x512xbf16, #tpu.memory_space<vmem>>, vector<128x512xbf16>
    %cst_51 = arith.constant dense<0.000000e+00> : vector<8x512xf32>
    %128 = tpu.matmul %126, %127, %cst_51 {dimension_numbers = #tpu.dot_dimension_numbers<[1], [0], [0], [1], [0, 0, 1, 1], [], []>} : vector<8x128xbf16>, vector<128x512xbf16>, vector<8x512xf32> -> vector<8x512xf32>
    %129 = arith.addf %125, %128 : vector<8x512xf32>
    %130 = vector.extract_strided_slice %129 {offsets = [0, 0], sizes = [8, 384], strides = [1, 1]} : vector<8x512xf32> to vector<8x384xf32>
    %131 = arith.negf %130 : vector<8x384xf32>
    %132 = math.exp %131 : vector<8x384xf32>
    %cst_52 = arith.constant 1.000000e+00 : f32
    %133 = vector.broadcast %cst_52 : f32 to vector<8x384xf32>
    %134 = arith.addf %133, %132 : vector<8x384xf32>
    %135 = arith.divf %133, %134 : vector<8x384xf32>
    %136 = vector.extract_strided_slice %129 {offsets = [0, 384], sizes = [8, 128], strides = [1, 1]} : vector<8x512xf32> to vector<8x128xf32>
    %137 = math.tanh %136 : vector<8x128xf32>
    %138 = vector.extract_strided_slice %135 {offsets = [0, 0], sizes = [8, 128], strides = [1, 1]} : vector<8x384xf32> to vector<8x128xf32>
    %139 = vector.extract_strided_slice %135 {offsets = [0, 128], sizes = [8, 128], strides = [1, 1]} : vector<8x384xf32> to vector<8x128xf32>
    %140 = vector.extract_strided_slice %135 {offsets = [0, 256], sizes = [8, 128], strides = [1, 1]} : vector<8x384xf32> to vector<8x128xf32>
    %141 = arith.mulf %139, %121 : vector<8x128xf32>
    %142 = arith.mulf %138, %137 : vector<8x128xf32>
    %143 = arith.addf %141, %142 : vector<8x128xf32>
    %144 = math.tanh %143 : vector<8x128xf32>
    %145 = arith.mulf %140, %144 : vector<8x128xf32>
    %c40_53 = arith.constant 40 : index
    %c0_54 = arith.constant 0 : index
    %146 = vector.load %arg12[%c40_53, %c0_54] : memref<48x128xf32, #tpu.memory_space<vmem>>, vector<8x128xf32>
    tpu.vector_store %arg12[%c40_53, %c0_54], %145 {strides = array<i32>} : memref<48x128xf32, #tpu.memory_space<vmem>>, vector<8x128xf32>,
    %c0_55 = arith.constant 0 : index
    %c0_56 = arith.constant 0 : index
    %147 = vector.load %arg10[%c0_55, %c0_56] : memref<8x128xf32, #tpu.memory_space<vmem>>, vector<8x128xf32>
    tpu.vector_store %arg10[%c0_55, %c0_56], %145 {strides = array<i32>} : memref<8x128xf32, #tpu.memory_space<vmem>>, vector<8x128xf32>,
    %c0_57 = arith.constant 0 : index
    %c0_58 = arith.constant 0 : index
    %148 = vector.load %arg11[%c0_57, %c0_58] : memref<8x128xf32, #tpu.memory_space<vmem>>, vector<8x128xf32>
    tpu.vector_store %arg11[%c0_57, %c0_58], %143 {strides = array<i32>} : memref<8x128xf32, #tpu.memory_space<vmem>>, vector<8x128xf32>,
    %c1_i32_59 = arith.constant 1 : i32
    %149 = tpu.memref_slice %arg16[%c1_i32_59] : memref<2x!tpu.dma_semaphore, #tpu.memory_space<semaphore_mem>> -> memref<1x!tpu.dma_semaphore, #tpu.memory_space<semaphore_mem>>
    %150 = tpu.memref_squeeze %149 : memref<1x!tpu.dma_semaphore, #tpu.memory_space<semaphore_mem>> -> memref<!tpu.dma_semaphore, #tpu.memory_space<semaphore_mem>>
    tpu.wait_dma2 semaphore(%150 : memref<!tpu.dma_semaphore, #tpu.memory_space<semaphore_mem>>) src(%arg8 : memref<128x128xbf16, #tpu.memory_space<any>>) dst(%arg15 : memref<128x128xbf16, #tpu.memory_space<vmem>>)
    %c0_60 = arith.constant 0 : index
    %c0_61 = arith.constant 0 : index
    %151 = vector.load %arg12[%c0_60, %c0_61] : memref<48x128xf32, #tpu.memory_space<vmem>>, vector<48x128xf32>
    %152 = arith.truncf %151 : vector<48x128xf32> to vector<48x128xbf16>
    %c0_62 = arith.constant 0 : index
    %c0_63 = arith.constant 0 : index
    %153 = vector.load %arg15[%c0_62, %c0_63] : memref<128x128xbf16, #tpu.memory_space<vmem>>, vector<128x128xbf16>
    %cst_64 = arith.constant dense<0.000000e+00> : vector<48x128xf32>
    %154 = tpu.matmul %152, %153, %cst_64 {dimension_numbers = #tpu.dot_dimension_numbers<[1], [0], [0], [1], [0, 0, 1, 1], [], []>} : vector<48x128xbf16>, vector<128x128xbf16>, vector<48x128xf32> -> vector<48x128xf32>
    %c0_65 = arith.constant 0 : index
    %c0_66 = arith.constant 0 : index
    %155 = vector.load %arg4[%c0_65, %c0_66] : memref<1x128xf32, #tpu.memory_space<vmem>>, vector<1x128xf32>
    %156 = vector.broadcast %155 : vector<1x128xf32> to vector<48x128xf32>
    %157 = arith.addf %154, %156 : vector<48x128xf32>
    %c0_67 = arith.constant 0 : index
    %c0_68 = arith.constant 0 : index
    %158 = vector.load %arg9[%c0_67, %c0_68] : memref<48x128xf32, #tpu.memory_space<vmem>>, vector<48x128xf32>
    tpu.vector_store %arg9[%c0_67, %c0_68], %157 {strides = array<i32>} : memref<48x128xf32, #tpu.memory_space<vmem>>, vector<48x128xf32>,
    return
  }
  func.func @transform_0(%arg0: i32) -> (i32, i32) {
    %c0_i32 = arith.constant 0 : i32
    %c0_i32_0 = arith.constant 0 : i32
    %c0_i32_1 = arith.constant 0 : i32
    return %c0_i32, %c0_i32_0 : i32, i32
  }
  func.func @transform_1(%arg0: i32) -> (i32, i32) {
    %c0_i32 = arith.constant 0 : i32
    %c0_i32_0 = arith.constant 0 : i32
    %c0_i32_1 = arith.constant 0 : i32
    return %c0_i32, %c0_i32_0 : i32, i32
  }
  func.func @transform_2(%arg0: i32) -> (i32, i32) {
    %c0_i32 = arith.constant 0 : i32
    %c0_i32_0 = arith.constant 0 : i32
    %c0_i32_1 = arith.constant 0 : i32
    return %c0_i32, %c0_i32_0 : i32, i32
  }
  func.func @transform_3(%arg0: i32) -> (i32, i32) {
    %c0_i32 = arith.constant 0 : i32
    %c0_i32_0 = arith.constant 0 : i32
    %c0_i32_1 = arith.constant 0 : i32
    return %c0_i32, %c0_i32_0 : i32, i32
  }
  func.func @transform_4(%arg0: i32) -> (i32, i32) {
    %c0_i32 = arith.constant 0 : i32
    %c0_i32_0 = arith.constant 0 : i32
    %c0_i32_1 = arith.constant 0 : i32
    return %c0_i32, %c0_i32_0 : i32, i32
  }
  func.func @transform_5(%arg0: i32) -> (i32, i32) {
    %c0_i32 = arith.constant 0 : i32
    %c0_i32_0 = arith.constant 0 : i32
    %c0_i32_1 = arith.constant 0 : i32
    return %c0_i32, %c0_i32_0 : i32, i32
  }
  func.func @transform_8(%arg0: i32) -> (i32, i32) {
    %c0_i32 = arith.constant 0 : i32
    %c0_i32_0 = arith.constant 0 : i32
    %c0_i32_1 = arith.constant 0 : i32
    return %c0_i32, %c0_i32_0 : i32, i32
  }
  func.func @transform_9(%arg0: i32) -> (i32, i32) {
    %c0_i32 = arith.constant 0 : i32
    %c0_i32_0 = arith.constant 0 : i32
    %c0_i32_1 = arith.constant 0 : i32
    return %c0_i32, %c0_i32_0 : i32, i32
  }
  func.func @transform_10(%arg0: i32) -> (i32, i32) {
    %c0_i32 = arith.constant 0 : i32
    %c0_i32_0 = arith.constant 0 : i32
    %c0_i32_1 = arith.constant 0 : i32
    return %c0_i32, %c0_i32_0 : i32, i32
  }
}

</mosaic_0001>

<llo_original>
// kernel: tpu_custom_call.1
$region0: #{tpu_custom_call.1}
  #allocation0 [shape = 'u32[]', space=smem, size = 0x4, offset = 0x4, fixed_abs, tag = 'smem constant byte address 0x4 - core index']
  #allocation1 [shape = 'u32[72,128]{1,0:T(1,128)}', space=vmem, size = 0x9000, scoped, tag = 'internal scratch']
  #allocation2 [shape = 'f32[48,128]{1,0:T(8,128)}', space=vmem, size = 0x6000, scoped, tag = 'scratch operand']
  #allocation3 [shape = 'f32[48,512]{1,0:T(8,128)}', space=vmem, size = 0x18000, scoped, tag = 'scratch operand']
  #allocation4 [shape = 'bf16[128,512]{1,0:T(8,128)(2,1)}', space=vmem, size = 0x20000, scoped, tag = 'scratch operand']
  #allocation5 [shape = 'bf16[128,128]{1,0:T(8,128)(2,1)}', space=vmem, size = 0x8000, scoped, tag = 'scratch operand']
  #allocation6 [shape = 's32[2]{0}', space=sflag, size = 0x8, scoped, tag = 'scratch operand']
  #allocation20 [shape = 's32[]', space=sflag, size = 0x4, offset = 0, fixed_abs, tag = 'sflag constant byte address 0x0 - dummy sync flag']
  #allocation21 [shape = 's32[]', space=sflag, size = 0x4, offset = 0, fixed_abs, tag = 'sflag constant byte address 0x0 - dummy sync flag']
  #allocation22 [shape = 'u32[]', space=smem, size = 0x4, offset = 0x44, fixed_abs, tag = 'smem constant byte address 0x44 - assertion arg 0']
  #allocation23 [shape = 'u32[]', space=smem, size = 0x4, offset = 0x48, fixed_abs, tag = 'smem constant byte address 0x48 - assertion arg 1']
  #allocation24 [shape = 's32[]', space=sflag, size = 0x4, offset = 0, fixed_abs, tag = 'sflag constant byte address 0x0 - dummy sync flag']
  #allocation25 [shape = 's32[]', space=sflag, size = 0x4, offset = 0, fixed_abs, tag = 'sflag constant byte address 0x0 - dummy sync flag']
  %s0 = inlined_call_operand.hbm [shape: bf16[48,128], index: 0, kind: input, shape index: {}]
  %s1 = inlined_call_operand.hbm [shape: bf16[128,512], index: 1, kind: input, shape index: {}]
  %s2 = inlined_call_operand.hbm [shape: f32[1,512], index: 2, kind: input, shape index: {}]
  %s3 = inlined_call_operand.vmem [shape: f32[1,128], index: 3, kind: input, shape index: {}]
  %s4 = inlined_call_operand.hbm [shape: f32[8,128], index: 4, kind: input, shape index: {}]
  %s5 = inlined_call_operand.hbm [shape: f32[8,128], index: 5, kind: input, shape index: {}]
  %s6 = inlined_call_operand.hbm [shape: bf16[128,512], index: 6, kind: input, shape index: {}]
  %s7 = inlined_call_operand.hbm [shape: bf16[128,128], index: 7, kind: input, shape index: {}]
  %s8 = inlined_call_operand.hbm [shape: f32[48,128], index: 8, kind: output, shape index: {0}]
  %s9 = inlined_call_operand.hbm [shape: f32[8,128], index: 9, kind: output, shape index: {1}]
  %s10 = inlined_call_operand.hbm [shape: f32[8,128], index: 10, kind: output, shape index: {2}]
  %11 = xla_tuple %s8, %s9, %s10
  %s12 = sld [smem:[#allocation0]]
  $region78: #{tpu_custom_call.1} parent=0
    _
  %s14 = ssub.s32 1, %s12
  %s15 = scalar_select 0, %s14, %s12
  $region1: #{tpu_custom_call.1} parent=0
    #allocation7 [shape = 'u8[12288]{0}', space=vmem, size = 0x3000, scoped, tag = 'input window, operand 0, single buffered']
    #allocation8 [shape = 's32[1]{0}', space=sflag, size = 0x4, scoped, tag = 'scoped memory for tpu_custom_call.1']
    #allocation9 [shape = 's32[1]{0}', space=sflag, size = 0x4, scoped, tag = 'scoped memory for tpu_custom_call.1']
    #allocation10 [shape = 'u8[131072]{0}', space=vmem, size = 0x20000, scoped, tag = 'input window, operand 1, single buffered']
    #allocation11 [shape = 's32[1]{0}', space=sflag, size = 0x4, scoped, tag = 'scoped memory for tpu_custom_call.1']
    #allocation12 [shape = 'u8[2048]{0}', space=vmem, size = 0x800, scoped, tag = 'input window, operand 2, single buffered']
    #allocation13 [shape = 'u8[4096]{0}', space=vmem, size = 0x1000, scoped, tag = 'input window, operand 4, single buffered']
    #allocation14 [shape = 's32[1]{0}', space=sflag, size = 0x4, scoped, tag = 'scoped memory for tpu_custom_call.1']
    #allocation15 [shape = 'u8[4096]{0}', space=vmem, size = 0x1000, scoped, tag = 'input window, operand 5, single buffered']
    #allocation16 [shape = 'u8[24576]{0}', space=vmem, size = 0x6000, scoped, tag = 'output window, operand 0, single buffered']
    #allocation17 [shape = 'u8[4096]{0}', space=vmem, size = 0x1000, scoped, tag = 'output window, operand 1, single buffered']
    #allocation18 [shape = 's32[1]{0}', space=sflag, size = 0x4, scoped, tag = 'scoped memory for tpu_custom_call.1']
    #allocation19 [shape = 'u8[4096]{0}', space=vmem, size = 0x1000, scoped, tag = 'output window, operand 2, single buffered']
    %16 = vsyncpa [#allocation8], 0
    %17 = vsyncpa [#allocation11], 0
    %18 = vsyncpa [#allocation14], 0
    %19 = vsyncpa [#allocation9], 0
    %20 = vsyncpa [#allocation18], 0
    // Predicated region
    $region2: #{tpu_custom_call.1} parent=1 // pred_check
      _
    $region3: #{tpu_custom_call.1} parent=1 // pred_check_branch
      %22 = sbr.rel (0) target = $region5
    $region4: #{tpu_custom_call.1} parent=1 // pred_region
      %24 = vsyncadd [#allocation8], 0
      %s25 = sshll.u32 %s0, 4
      %s26 = int_to_ptr.hbm [resolvable:$true] %s25
      %s27 = sshll.u32 [#allocation7], 4
      %s28 = int_to_ptr.vmem [resolvable:$true] %s27
      %33 = dma.hbm_to_vmem [thread:$0]  %s26, 384, %s28, [#allocation8], 64, 64, 4
    $region5: #{tpu_custom_call.1} parent=1 // pred_fallthru
      _
    // Predicated region
    $region6: #{tpu_custom_call.1} parent=1 // pred_check
      _
    $region7: #{tpu_custom_call.1} parent=1 // pred_check_branch
      %35 = sbr.rel (0) target = $region9
    $region8: #{tpu_custom_call.1} parent=1 // pred_region
      %37 = vsyncadd [#allocation11], 0
      %s38 = sshll.u32 %s1, 4
      %s39 = int_to_ptr.hbm [resolvable:$true] %s38
      %s40 = sshll.u32 [#allocation10], 4
      %s41 = int_to_ptr.vmem [resolvable:$true] %s40
      %46 = dma.hbm_to_vmem [thread:$0]  %s39, 4096, %s41, [#allocation11], 256, 256, 16
    $region9: #{tpu_custom_call.1} parent=1 // pred_fallthru
      _
    // Predicated region
    $region10: #{tpu_custom_call.1} parent=1 // pred_check
      _
    $region11: #{tpu_custom_call.1} parent=1 // pred_check_branch
      %48 = sbr.rel (0) target = $region13
    $region12: #{tpu_custom_call.1} parent=1 // pred_region
      %50 = vsyncadd [#allocation11], 0
      %s52 = sshll.u32 %s2, 4
      %s53 = int_to_ptr.hbm [resolvable:$true] %s52
      %s54 = sshll.u32 [#allocation12], 4
      %s55 = int_to_ptr.vmem [resolvable:$true] %s54
      %57 = dma.hbm_to_vmem [thread:$0]  %s53, 64, %s55, [#allocation11]
    $region13: #{tpu_custom_call.1} parent=1 // pred_fallthru
      _
    // Predicated region
    $region14: #{tpu_custom_call.1} parent=1 // pred_check
      _
    $region15: #{tpu_custom_call.1} parent=1 // pred_check_branch
      %59 = sbr.rel (0) target = $region17
    $region16: #{tpu_custom_call.1} parent=1 // pred_region
      _
    $region17: #{tpu_custom_call.1} parent=1 // pred_fallthru
      _
    // Predicated region
    $region18: #{tpu_custom_call.1} parent=1 // pred_check
      _
    $region19: #{tpu_custom_call.1} parent=1 // pred_check_branch
      %61 = sbr.rel (0) target = $region21
    $region20: #{tpu_custom_call.1} parent=1 // pred_region
      %63 = vsyncadd [#allocation14], 0
      %s65 = sshll.u32 %s4, 4
      %s66 = int_to_ptr.hbm [resolvable:$true] %s65
      %s67 = sshll.u32 [#allocation13], 4
      %s68 = int_to_ptr.vmem [resolvable:$true] %s67
      %70 = dma.hbm_to_vmem [thread:$0]  %s66, 128, %s68, [#allocation14]
    $region21: #{tpu_custom_call.1} parent=1 // pred_fallthru
      _
    // Predicated region
    $region22: #{tpu_custom_call.1} parent=1 // pred_check
      _
    $region23: #{tpu_custom_call.1} parent=1 // pred_check_branch
      %72 = sbr.rel (0) target = $region25
    $region24: #{tpu_custom_call.1} parent=1 // pred_region
      %74 = vsyncadd [#allocation14], 0
      %s76 = sshll.u32 %s5, 4
      %s77 = int_to_ptr.hbm [resolvable:$true] %s76
      %s78 = sshll.u32 [#allocation15], 4
      %s79 = int_to_ptr.vmem [resolvable:$true] %s78
      %81 = dma.hbm_to_vmem [thread:$0]  %s77, 128, %s79, [#allocation14]
    $region25: #{tpu_custom_call.1} parent=1 // pred_fallthru
      _
    // Predicated region
    $region26: #{tpu_custom_call.1} parent=1 // pred_check
      _
    $region27: #{tpu_custom_call.1} parent=1 // pred_check_branch
      %83 = sbr.rel (0) target = $region29
    $region28: #{tpu_custom_call.1} parent=1 // pred_region
      %85 = dma.done [#allocation8], 384
    $region29: #{tpu_custom_call.1} parent=1 // pred_fallthru
      _
    // Predicated region
    $region30: #{tpu_custom_call.1} parent=1 // pred_check
      _
    $region31: #{tpu_custom_call.1} parent=1 // pred_check_branch
      %87 = sbr.rel (0) target = $region33
    $region32: #{tpu_custom_call.1} parent=1 // pred_region
      %89 = dma.done [#allocation11], 4096
    $region33: #{tpu_custom_call.1} parent=1 // pred_fallthru
      _
    // Predicated region
    $region34: #{tpu_custom_call.1} parent=1 // pred_check
      _
    $region35: #{tpu_custom_call.1} parent=1 // pred_check_branch
      %91 = sbr.rel (0) target = $region37
    $region36: #{tpu_custom_call.1} parent=1 // pred_region
      %93 = dma.done [#allocation11], 64
    $region37: #{tpu_custom_call.1} parent=1 // pred_fallthru
      _
    // Predicated region
    $region38: #{tpu_custom_call.1} parent=1 // pred_check
      _
    $region39: #{tpu_custom_call.1} parent=1 // pred_check_branch
      %95 = sbr.rel (0) target = $region41
    $region40: #{tpu_custom_call.1} parent=1 // pred_region
      %97 = dma.done [#allocation14], 128
    $region41: #{tpu_custom_call.1} parent=1 // pred_fallthru
      _
    // Predicated region
    $region42: #{tpu_custom_call.1} parent=1 // pred_check
      _
    $region43: #{tpu_custom_call.1} parent=1 // pred_check_branch
      %99 = sbr.rel (0) target = $region45
    $region44: #{tpu_custom_call.1} parent=1 // pred_region
      %101 = dma.done [#allocation14], 128
    $region45: #{tpu_custom_call.1} parent=1 // pred_fallthru
      _
    // Predicated region
    $region46: #{tpu_custom_call.1} parent=1 // pred_check
      _
    $region47: #{tpu_custom_call.1} parent=1 // pred_check_branch
      %103 = sbr.rel target = $region49
    $region48: #{tpu_custom_call.1} parent=1 // pred_region
      %104 = sst [smem:[#allocation22]] [#allocation21]
      %105 = sst [smem:[#allocation23]] [#allocation20]
    $region49: #{tpu_custom_call.1} parent=1 // pred_fallthru
      _
    %107 = shalt.err (0)
    %s109 = sshll.u32 %s6, 4
    %s110 = int_to_ptr.hbm [resolvable:$true] %s109
    %s111 = sshll.u32 [#allocation4], 4
    %s112 = int_to_ptr.vmem [resolvable:$true] %s111
    %114 = dma.hbm_to_vmem [thread:$0]  %s110, 4096, %s112, [#allocation6]
    %s115 = scalar_lea.sflag [#allocation6], 1
    // Predicated region
    $region50: #{tpu_custom_call.1} parent=1 // pred_check
      _
    $region51: #{tpu_custom_call.1} parent=1 // pred_check_branch
      %117 = sbr.rel target = $region53
    $region52: #{tpu_custom_call.1} parent=1 // pred_region
      %118 = sst [smem:[#allocation22]] [#allocation25]
      %119 = sst [smem:[#allocation23]] [#allocation24]
    $region53: #{tpu_custom_call.1} parent=1 // pred_fallthru
      _
    %121 = shalt.err (0)
    %s123 = sshll.u32 %s7, 4
    %s124 = int_to_ptr.hbm [resolvable:$true] %s123
    %s125 = sshll.u32 [#allocation5], 4
    %s126 = int_to_ptr.vmem [resolvable:$true] %s125
    %128 = dma.hbm_to_vmem [thread:$0]  %s124, 1024, %s126, %s115
    %v129 = vld [vmem:[#allocation7] sm:$0xf]
    %v130 = vld [vmem:[#allocation7 + $0x4] sm:$0xf]
    %v131 = vld [vmem:[#allocation7 + $0x8] sm:$0xf]
    %v132 = vld [vmem:[#allocation7 + $0xc] sm:$0xf]
    %v133 = vld [vmem:[#allocation7 + $0x10] sm:$0xf]
    %v134 = vld [vmem:[#allocation7 + $0x14] sm:$0xf]
    %v135 = vld [vmem:[#allocation10] sm:$0xff]
    %v136 = vld [vmem:[#allocation10 + $0x8] sm:$0xff]
    %v137 = vld [vmem:[#allocation10 + $0x10] sm:$0xff]
    %v138 = vld [vmem:[#allocation10 + $0x18] sm:$0xff]
    %v139 = vld [vmem:[#allocation10 + $0x20] sm:$0xff]
    %v140 = vld [vmem:[#allocation10 + $0x28] sm:$0xff]
    %v141 = vld [vmem:[#allocation10 + $0x30] sm:$0xff]
    %v142 = vld [vmem:[#allocation10 + $0x38] sm:$0xff]
    %v143 = vld [vmem:[#allocation10 + $0x40] sm:$0xff]
    %v144 = vld [vmem:[#allocation10 + $0x48] sm:$0xff]
    %v145 = vld [vmem:[#allocation10 + $0x50] sm:$0xff]
    %v146 = vld [vmem:[#allocation10 + $0x58] sm:$0xff]
    %v147 = vld [vmem:[#allocation10 + $0x60] sm:$0xff]
    %v148 = vld [vmem:[#allocation10 + $0x68] sm:$0xff]
    %v149 = vld [vmem:[#allocation10 + $0x70] sm:$0xff]
    %v150 = vld [vmem:[#allocation10 + $0x78] sm:$0xff]
    %v151 = vld [vmem:[#allocation10 + $0x80] sm:$0xff]
    %v152 = vld [vmem:[#allocation10 + $0x88] sm:$0xff]
    %v153 = vld [vmem:[#allocation10 + $0x90] sm:$0xff]
    %v154 = vld [vmem:[#allocation10 + $0x98] sm:$0xff]
    %v155 = vld [vmem:[#allocation10 + $0xa0] sm:$0xff]
    %v156 = vld [vmem:[#allocation10 + $0xa8] sm:$0xff]
    %v157 = vld [vmem:[#allocation10 + $0xb0] sm:$0xff]
    %v158 = vld [vmem:[#allocation10 + $0xb8] sm:$0xff]
    %v159 = vld [vmem:[#allocation10 + $0xc0] sm:$0xff]
    %v160 = vld [vmem:[#allocation10 + $0xc8] sm:$0xff]
    %v161 = vld [vmem:[#allocation10 + $0xd0] sm:$0xff]
    %v162 = vld [vmem:[#allocation10 + $0xd8] sm:$0xff]
    %v163 = vld [vmem:[#allocation10 + $0xe0] sm:$0xff]
    %v164 = vld [vmem:[#allocation10 + $0xe8] sm:$0xff]
    %v165 = vld [vmem:[#allocation10 + $0xf0] sm:$0xff]
    %v166 = vld [vmem:[#allocation10 + $0xf8] sm:$0xff]
    %v167 = vld [vmem:[#allocation12] sm:$0xf]
    %v169 = vperm.slane %v167, 0
    %v170 = vperm.slane %v167, 1
    %v171 = vperm.slane %v167, 2
    %v172 = vperm.slane %v167, 3
    %v183 = vunpack.c.l.b16 %v129
    %v184 = vunpack.c.l.b16 %v130
    %v185 = vunpack.c.l.b16 %v131
    %v186 = vunpack.c.l.b16 %v132
    %v187 = vunpack.c.l.b16 %v133
    %v188 = vunpack.c.l.b16 %v134
    %v189 = vpack.c.b16 %v184, %v183
    %v190 = vpack.c.b16 %v186, %v185
    %v191 = vpack.c.b16 %v188, %v187
    %v227 = vunpack.c.l.b16 %v135
    %v228 = vunpack.c.h.b16 %v135
    %v229 = vunpack.c.l.b16 %v136
    %v230 = vunpack.c.h.b16 %v136
    %v231 = vunpack.c.l.b16 %v137
    %v232 = vunpack.c.h.b16 %v137
    %v233 = vunpack.c.l.b16 %v138
    %v234 = vunpack.c.h.b16 %v138
    %v235 = vunpack.c.l.b16 %v139
    %v236 = vunpack.c.h.b16 %v139
    %v237 = vunpack.c.l.b16 %v140
    %v238 = vunpack.c.h.b16 %v140
    %v239 = vunpack.c.l.b16 %v141
    %v240 = vunpack.c.h.b16 %v141
    %v241 = vunpack.c.l.b16 %v142
    %v242 = vunpack.c.h.b16 %v142
    %v243 = vunpack.c.l.b16 %v143
    %v244 = vunpack.c.h.b16 %v143
    %v245 = vunpack.c.l.b16 %v144
    %v246 = vunpack.c.h.b16 %v144
    %v247 = vunpack.c.l.b16 %v145
    %v248 = vunpack.c.h.b16 %v145
    %v249 = vunpack.c.l.b16 %v146
    %v250 = vunpack.c.h.b16 %v146
    %v251 = vunpack.c.l.b16 %v147
    %v252 = vunpack.c.h.b16 %v147
    %v253 = vunpack.c.l.b16 %v148
    %v254 = vunpack.c.h.b16 %v148
    %v255 = vunpack.c.l.b16 %v149
    %v256 = vunpack.c.h.b16 %v149
    %v257 = vunpack.c.l.b16 %v150
    %v258 = vunpack.c.h.b16 %v150
    %v259 = vunpack.c.l.b16 %v151
    %v260 = vunpack.c.h.b16 %v151
    %v261 = vunpack.c.l.b16 %v152
    %v262 = vunpack.c.h.b16 %v152
    %v263 = vunpack.c.l.b16 %v153
    %v264 = vunpack.c.h.b16 %v153
    %v265 = vunpack.c.l.b16 %v154
    %v266 = vunpack.c.h.b16 %v154
    %v267 = vunpack.c.l.b16 %v155
    %v268 = vunpack.c.h.b16 %v155
    %v269 = vunpack.c.l.b16 %v156
    %v270 = vunpack.c.h.b16 %v156
    %v271 = vunpack.c.l.b16 %v157
    %v272 = vunpack.c.h.b16 %v157
    %v273 = vunpack.c.l.b16 %v158
    %v274 = vunpack.c.h.b16 %v158
    %v275 = vunpack.c.l.b16 %v159
    %v276 = vunpack.c.h.b16 %v159
    %v277 = vunpack.c.l.b16 %v160
    %v278 = vunpack.c.h.b16 %v160
    %v279 = vunpack.c.l.b16 %v161
    %v280 = vunpack.c.h.b16 %v161
    %v281 = vunpack.c.l.b16 %v162
    %v282 = vunpack.c.h.b16 %v162
    %v283 = vunpack.c.l.b16 %v163
    %v284 = vunpack.c.h.b16 %v163
    %v285 = vunpack.c.l.b16 %v164
    %v286 = vunpack.c.h.b16 %v164
    %v287 = vunpack.c.l.b16 %v165
    %v288 = vunpack.c.h.b16 %v165
    %v289 = vunpack.c.l.b16 %v166
    %v290 = vunpack.c.h.b16 %v166
    %v291 = vpack.c.b16 %v231, %v227
    %v292 = vpack.c.b16 %v232, %v228
    %v293 = vpack.c.b16 %v233, %v229
    %v294 = vpack.c.b16 %v234, %v230
    %v295 = vpack.c.b16 %v239, %v235
    %v296 = vpack.c.b16 %v240, %v236
    %v297 = vpack.c.b16 %v241, %v237
    %v298 = vpack.c.b16 %v242, %v238
    %v299 = vpack.c.b16 %v247, %v243
    %v300 = vpack.c.b16 %v248, %v244
    %v301 = vpack.c.b16 %v249, %v245
    %v302 = vpack.c.b16 %v250, %v246
    %v303 = vpack.c.b16 %v255, %v251
    %v304 = vpack.c.b16 %v256, %v252
    %v305 = vpack.c.b16 %v257, %v253
    %v306 = vpack.c.b16 %v258, %v254
    %v307 = vpack.c.b16 %v263, %v259
    %v308 = vpack.c.b16 %v264, %v260
    %v309 = vpack.c.b16 %v265, %v261
    %v310 = vpack.c.b16 %v266, %v262
    %v311 = vpack.c.b16 %v271, %v267
    %v312 = vpack.c.b16 %v272, %v268
    %v313 = vpack.c.b16 %v273, %v269
    %v314 = vpack.c.b16 %v274, %v270
    %v315 = vpack.c.b16 %v279, %v275
    %v316 = vpack.c.b16 %v280, %v276
    %v317 = vpack.c.b16 %v281, %v277
    %v318 = vpack.c.b16 %v282, %v278
    %v319 = vpack.c.b16 %v287, %v283
    %v320 = vpack.c.b16 %v288, %v284
    %v321 = vpack.c.b16 %v289, %v285
    %v322 = vpack.c.b16 %v290, %v286
    %355 = vmatpush.bf16.msra.mxu0 %v319
    %356 = vmatpush.bf16.msra.mxu0 %v315
    %357 = vmatpush.bf16.msra.mxu0 %v311
    %358 = vmatpush.bf16.msra.mxu0 %v307
    %359 = vmatpush.bf16.msra.mxu0 %v303
    %360 = vmatpush.bf16.msra.mxu0 %v299
    %361 = vmatpush.bf16.msra.mxu0 %v295
    %362 = vmatpush.bf16.msra.mxu0 %v291
    %363 = vmatmul.bf16.gmra.mxu0 %v189
    %v364 = vpop.f32.mrf.mxu0
    %v365 = vadd.f32 %v169, %v364
    %v366 = vpop.f32.mrf.mxu0
    %v367 = vadd.f32 %v169, %v366
    %368 = vmatmul.bf16.gmra.mxu0 %v190
    %v369 = vpop.f32.mrf.mxu0
    %v370 = vadd.f32 %v169, %v369
    %v371 = vpop.f32.mrf.mxu0
    %v372 = vadd.f32 %v169, %v371
    %373 = vmatmul.bf16.gmra.mxu0 %v191
    %v374 = vpop.f32.mrf.mxu0
    %v375 = vadd.f32 %v169, %v374
    %v376 = vpop.f32.mrf.mxu0
    %v377 = vadd.f32 %v169, %v376
    %378 = vdwg.mxu0
    %379 = vmatpush.bf16.msra.mxu0 %v320
    %380 = vmatpush.bf16.msra.mxu0 %v316
    %381 = vmatpush.bf16.msra.mxu0 %v312
    %382 = vmatpush.bf16.msra.mxu0 %v308
    %383 = vmatpush.bf16.msra.mxu0 %v304
    %384 = vmatpush.bf16.msra.mxu0 %v300
    %385 = vmatpush.bf16.msra.mxu0 %v296
    %386 = vmatpush.bf16.msra.mxu0 %v292
    %387 = vmatmul.bf16.gmra.mxu0 %v189
    %v388 = vpop.f32.mrf.mxu0
    %v389 = vadd.f32 %v170, %v388
    %v390 = vpop.f32.mrf.mxu0
    %v391 = vadd.f32 %v170, %v390
    %392 = vmatmul.bf16.gmra.mxu0 %v190
    %v393 = vpop.f32.mrf.mxu0
    %v394 = vadd.f32 %v170, %v393
    %v395 = vpop.f32.mrf.mxu0
    %v396 = vadd.f32 %v170, %v395
    %397 = vmatmul.bf16.gmra.mxu0 %v191
    %v398 = vpop.f32.mrf.mxu0
    %v399 = vadd.f32 %v170, %v398
    %v400 = vpop.f32.mrf.mxu0
    %v401 = vadd.f32 %v170, %v400
    %402 = vdwg.mxu0
    %403 = vmatpush.bf16.msra.mxu0 %v321
    %404 = vmatpush.bf16.msra.mxu0 %v317
    %405 = vmatpush.bf16.msra.mxu0 %v313
    %406 = vmatpush.bf16.msra.mxu0 %v309
    %407 = vmatpush.bf16.msra.mxu0 %v305
    %408 = vmatpush.bf16.msra.mxu0 %v301
    %409 = vmatpush.bf16.msra.mxu0 %v297
    %410 = vmatpush.bf16.msra.mxu0 %v293
    %411 = vmatmul.bf16.gmra.mxu0 %v189
    %v412 = vpop.f32.mrf.mxu0
    %v413 = vadd.f32 %v171, %v412
    %v414 = vpop.f32.mrf.mxu0
    %v415 = vadd.f32 %v171, %v414
    %416 = vmatmul.bf16.gmra.mxu0 %v190
    %v417 = vpop.f32.mrf.mxu0
    %v418 = vadd.f32 %v171, %v417
    %v419 = vpop.f32.mrf.mxu0
    %v420 = vadd.f32 %v171, %v419
    %421 = vmatmul.bf16.gmra.mxu0 %v191
    %v422 = vpop.f32.mrf.mxu0
    %v423 = vadd.f32 %v171, %v422
    %v424 = vpop.f32.mrf.mxu0
    %v425 = vadd.f32 %v171, %v424
    %426 = vdwg.mxu0
    %427 = vmatpush.bf16.msra.mxu0 %v322
    %428 = vmatpush.bf16.msra.mxu0 %v318
    %429 = vmatpush.bf16.msra.mxu0 %v314
    %430 = vmatpush.bf16.msra.mxu0 %v310
    %431 = vmatpush.bf16.msra.mxu0 %v306
    %432 = vmatpush.bf16.msra.mxu0 %v302
    %433 = vmatpush.bf16.msra.mxu0 %v298
    %434 = vmatpush.bf16.msra.mxu0 %v294
    %435 = vmatmul.bf16.gmra.mxu0 %v189
    %v436 = vpop.f32.mrf.mxu0
    %v437 = vadd.f32 %v172, %v436
    %v438 = vpop.f32.mrf.mxu0
    %v439 = vadd.f32 %v172, %v438
    %440 = vmatmul.bf16.gmra.mxu0 %v190
    %v441 = vpop.f32.mrf.mxu0
    %v442 = vadd.f32 %v172, %v441
    %v443 = vpop.f32.mrf.mxu0
    %v444 = vadd.f32 %v172, %v443
    %445 = vmatmul.bf16.gmra.mxu0 %v191
    %v446 = vpop.f32.mrf.mxu0
    %v447 = vadd.f32 %v172, %v446
    %v448 = vpop.f32.mrf.mxu0
    %v449 = vadd.f32 %v172, %v448
    %450 = vdwg.mxu0
    %451 = vst [vmem:[#allocation3] sm:$0xff] %v365
    %452 = vst [vmem:[#allocation3 + $0x8] sm:$0xff] %v389
    %453 = vst [vmem:[#allocation3 + $0x10] sm:$0xff] %v413
    %454 = vst [vmem:[#allocation3 + $0x18] sm:$0xff] %v437
    %455 = vst [vmem:[#allocation3 + $0x20] sm:$0xff] %v367
    %456 = vst [vmem:[#allocation3 + $0x28] sm:$0xff] %v391
    %457 = vst [vmem:[#allocation3 + $0x30] sm:$0xff] %v415
    %458 = vst [vmem:[#allocation3 + $0x38] sm:$0xff] %v439
    %459 = vst [vmem:[#allocation3 + $0x40] sm:$0xff] %v370
    %460 = vst [vmem:[#allocation3 + $0x48] sm:$0xff] %v394
    %461 = vst [vmem:[#allocation3 + $0x50] sm:$0xff] %v418
    %462 = vst [vmem:[#allocation3 + $0x58] sm:$0xff] %v442
    %463 = vst [vmem:[#allocation3 + $0x60] sm:$0xff] %v372
    %464 = vst [vmem:[#allocation3 + $0x68] sm:$0xff] %v396
    %465 = vst [vmem:[#allocation3 + $0x70] sm:$0xff] %v420
    %466 = vst [vmem:[#allocation3 + $0x78] sm:$0xff] %v444
    %467 = vst [vmem:[#allocation3 + $0x80] sm:$0xff] %v375
    %468 = vst [vmem:[#allocation3 + $0x88] sm:$0xff] %v399
    %469 = vst [vmem:[#allocation3 + $0x90] sm:$0xff] %v423
    %470 = vst [vmem:[#allocation3 + $0x98] sm:$0xff] %v447
    %471 = vst [vmem:[#allocation3 + $0xa0] sm:$0xff] %v377
    %472 = vst [vmem:[#allocation3 + $0xa8] sm:$0xff] %v401
    %473 = vst [vmem:[#allocation3 + $0xb0] sm:$0xff] %v425
    %474 = vst [vmem:[#allocation3 + $0xb8] sm:$0xff] %v449
    %s475 = smul.u32 4, 16
    %s476 = smul.u32 %s475, 4
    %s477 = sshll.u32 %s476, 4
    %478 = dma.done [#allocation6], %s477
    %v479 = vld [vmem:[#allocation13] sm:$0xff]
    %v480 = vld [vmem:[#allocation15] sm:$0xff]
    %v481 = vld [vmem:[#allocation3] sm:$0xff]
    %v482 = vld [vmem:[#allocation3 + $0x8] sm:$0xff]
    %v483 = vld [vmem:[#allocation3 + $0x10] sm:$0xff]
    %v484 = vld [vmem:[#allocation3 + $0x18] sm:$0xff]
    %v485 = vpack.c.bf16 %v479, %v479
    %v486 = vld [vmem:[#allocation4] sm:$0xff]
    %v487 = vld [vmem:[#allocation4 + $0x8] sm:$0xff]
    %v488 = vld [vmem:[#allocation4 + $0x10] sm:$0xff]
    %v489 = vld [vmem:[#allocation4 + $0x18] sm:$0xff]
    %v490 = vld [vmem:[#allocation4 + $0x20] sm:$0xff]
    %v491 = vld [vmem:[#allocation4 + $0x28] sm:$0xff]
    %v492 = vld [vmem:[#allocation4 + $0x30] sm:$0xff]
    %v493 = vld [vmem:[#allocation4 + $0x38] sm:$0xff]
    %v494 = vld [vmem:[#allocation4 + $0x40] sm:$0xff]
    %v495 = vld [vmem:[#allocation4 + $0x48] sm:$0xff]
    %v496 = vld [vmem:[#allocation4 + $0x50] sm:$0xff]
    %v497 = vld [vmem:[#allocation4 + $0x58] sm:$0xff]
    %v498 = vld [vmem:[#allocation4 + $0x60] sm:$0xff]
    %v499 = vld [vmem:[#allocation4 + $0x68] sm:$0xff]
    %v500 = vld [vmem:[#allocation4 + $0x70] sm:$0xff]
    %v501 = vld [vmem:[#allocation4 + $0x78] sm:$0xff]
    %v502 = vld [vmem:[#allocation4 + $0x80] sm:$0xff]
    %v503 = vld [vmem:[#allocation4 + $0x88] sm:$0xff]
    %v504 = vld [vmem:[#allocation4 + $0x90] sm:$0xff]
    %v505 = vld [vmem:[#allocation4 + $0x98] sm:$0xff]
    %v506 = vld [vmem:[#allocation4 + $0xa0] sm:$0xff]
    %v507 = vld [vmem:[#allocation4 + $0xa8] sm:$0xff]
    %v508 = vld [vmem:[#allocation4 + $0xb0] sm:$0xff]
    %v509 = vld [vmem:[#allocation4 + $0xb8] sm:$0xff]
    %v510 = vld [vmem:[#allocation4 + $0xc0] sm:$0xff]
    %v511 = vld [vmem:[#allocation4 + $0xc8] sm:$0xff]
    %v512 = vld [vmem:[#allocation4 + $0xd0] sm:$0xff]
    %v513 = vld [vmem:[#allocation4 + $0xd8] sm:$0xff]
    %v514 = vld [vmem:[#allocation4 + $0xe0] sm:$0xff]
    %v515 = vld [vmem:[#allocation4 + $0xe8] sm:$0xff]
    %v516 = vld [vmem:[#allocation4 + $0xf0] sm:$0xff]
    %v517 = vld [vmem:[#allocation4 + $0xf8] sm:$0xff]
    %v550 = vunpack.c.l.b16 %v486
    %v551 = vunpack.c.h.b16 %v486
    %v552 = vunpack.c.l.b16 %v487
    %v553 = vunpack.c.h.b16 %v487
    %v554 = vunpack.c.l.b16 %v488
    %v555 = vunpack.c.h.b16 %v488
    %v556 = vunpack.c.l.b16 %v489
    %v557 = vunpack.c.h.b16 %v489
    %v558 = vunpack.c.l.b16 %v490
    %v559 = vunpack.c.h.b16 %v490
    %v560 = vunpack.c.l.b16 %v491
    %v561 = vunpack.c.h.b16 %v491
    %v562 = vunpack.c.l.b16 %v492
    %v563 = vunpack.c.h.b16 %v492
    %v564 = vunpack.c.l.b16 %v493
    %v565 = vunpack.c.h.b16 %v493
    %v566 = vunpack.c.l.b16 %v494
    %v567 = vunpack.c.h.b16 %v494
    %v568 = vunpack.c.l.b16 %v495
    %v569 = vunpack.c.h.b16 %v495
    %v570 = vunpack.c.l.b16 %v496
    %v571 = vunpack.c.h.b16 %v496
    %v572 = vunpack.c.l.b16 %v497
    %v573 = vunpack.c.h.b16 %v497
    %v574 = vunpack.c.l.b16 %v498
    %v575 = vunpack.c.h.b16 %v498
    %v576 = vunpack.c.l.b16 %v499
    %v577 = vunpack.c.h.b16 %v499
    %v578 = vunpack.c.l.b16 %v500
    %v579 = vunpack.c.h.b16 %v500
    %v580 = vunpack.c.l.b16 %v501
    %v581 = vunpack.c.h.b16 %v501
    %v582 = vunpack.c.l.b16 %v502
    %v583 = vunpack.c.h.b16 %v502
    %v584 = vunpack.c.l.b16 %v503
    %v585 = vunpack.c.h.b16 %v503
    %v586 = vunpack.c.l.b16 %v504
    %v587 = vunpack.c.h.b16 %v504
    %v588 = vunpack.c.l.b16 %v505
    %v589 = vunpack.c.h.b16 %v505
    %v590 = vunpack.c.l.b16 %v506
    %v591 = vunpack.c.h.b16 %v506
    %v592 = vunpack.c.l.b16 %v507
    %v593 = vunpack.c.h.b16 %v507
    %v594 = vunpack.c.l.b16 %v508
    %v595 = vunpack.c.h.b16 %v508
    %v596 = vunpack.c.l.b16 %v509
    %v597 = vunpack.c.h.b16 %v509
    %v598 = vunpack.c.l.b16 %v510
    %v599 = vunpack.c.h.b16 %v510
    %v600 = vunpack.c.l.b16 %v511
    %v601 = vunpack.c.h.b16 %v511
    %v602 = vunpack.c.l.b16 %v512
    %v603 = vunpack.c.h.b16 %v512
    %v604 = vunpack.c.l.b16 %v513
    %v605 = vunpack.c.h.b16 %v513
    %v606 = vunpack.c.l.b16 %v514
    %v607 = vunpack.c.h.b16 %v514
    %v608 = vunpack.c.l.b16 %v515
    %v609 = vunpack.c.h.b16 %v515
    %v610 = vunpack.c.l.b16 %v516
    %v611 = vunpack.c.h.b16 %v516
    %v612 = vunpack.c.l.b16 %v517
    %v613 = vunpack.c.h.b16 %v517
    %v614 = vpack.c.b16 %v554, %v550
    %v615 = vpack.c.b16 %v555, %v551
    %v616 = vpack.c.b16 %v556, %v552
    %v617 = vpack.c.b16 %v557, %v553
    %v618 = vpack.c.b16 %v562, %v558
    %v619 = vpack.c.b16 %v563, %v559
    %v620 = vpack.c.b16 %v564, %v560
    %v621 = vpack.c.b16 %v565, %v561
    %v622 = vpack.c.b16 %v570, %v566
    %v623 = vpack.c.b16 %v571, %v567
    %v624 = vpack.c.b16 %v572, %v568
    %v625 = vpack.c.b16 %v573, %v569
    %v626 = vpack.c.b16 %v578, %v574
    %v627 = vpack.c.b16 %v579, %v575
    %v628 = vpack.c.b16 %v580, %v576
    %v629 = vpack.c.b16 %v581, %v577
    %v630 = vpack.c.b16 %v586, %v582
    %v631 = vpack.c.b16 %v587, %v583
    %v632 = vpack.c.b16 %v588, %v584
    %v633 = vpack.c.b16 %v589, %v585
    %v634 = vpack.c.b16 %v594, %v590
    %v635 = vpack.c.b16 %v595, %v591
    %v636 = vpack.c.b16 %v596, %v592
    %v637 = vpack.c.b16 %v597, %v593
    %v638 = vpack.c.b16 %v602, %v598
    %v639 = vpack.c.b16 %v603, %v599
    %v640 = vpack.c.b16 %v604, %v600
    %v641 = vpack.c.b16 %v605, %v601
    %v642 = vpack.c.b16 %v610, %v606
    %v643 = vpack.c.b16 %v611, %v607
    %v644 = vpack.c.b16 %v612, %v608
    %v645 = vpack.c.b16 %v613, %v609
    %678 = vmatpush.bf16.msra.mxu0 %v642
    %679 = vmatpush.bf16.msra.mxu0 %v638
    %680 = vmatpush.bf16.msra.mxu0 %v634
    %681 = vmatpush.bf16.msra.mxu0 %v630
    %682 = vmatpush.bf16.msra.mxu0 %v626
    %683 = vmatpush.bf16.msra.mxu0 %v622
    %684 = vmatpush.bf16.msra.mxu0 %v618
    %685 = vmatpush.bf16.msra.mxu0 %v614
    %686 = vmatmul.bf16.gmra.mxu0 %v485
    %v687 = vpop.f32.mrf.mxu0
    %v688 = vadd.f32 0.0, %v687
    %v689 = vpop.f32.mrf.mxu0
    %690 = vdwg.mxu0
    %691 = vmatpush.bf16.msra.mxu0 %v643
    %692 = vmatpush.bf16.msra.mxu0 %v639
    %693 = vmatpush.bf16.msra.mxu0 %v635
    %694 = vmatpush.bf16.msra.mxu0 %v631
    %695 = vmatpush.bf16.msra.mxu0 %v627
    %696 = vmatpush.bf16.msra.mxu0 %v623
    %697 = vmatpush.bf16.msra.mxu0 %v619
    %698 = vmatpush.bf16.msra.mxu0 %v615
    %699 = vmatmul.bf16.gmra.mxu0 %v485
    %v700 = vpop.f32.mrf.mxu0
    %v701 = vadd.f32 0.0, %v700
    %v702 = vpop.f32.mrf.mxu0
    %703 = vdwg.mxu0
    %704 = vmatpush.bf16.msra.mxu0 %v644
    %705 = vmatpush.bf16.msra.mxu0 %v640
    %706 = vmatpush.bf16.msra.mxu0 %v636
    %707 = vmatpush.bf16.msra.mxu0 %v632
    %708 = vmatpush.bf16.msra.mxu0 %v628
    %709 = vmatpush.bf16.msra.mxu0 %v624
    %710 = vmatpush.bf16.msra.mxu0 %v620
    %711 = vmatpush.bf16.msra.mxu0 %v616
    %712 = vmatmul.bf16.gmra.mxu0 %v485
    %v713 = vpop.f32.mrf.mxu0
    %v714 = vadd.f32 0.0, %v713
    %v715 = vpop.f32.mrf.mxu0
    %716 = vdwg.mxu0
    %717 = vmatpush.bf16.msra.mxu0 %v645
    %718 = vmatpush.bf16.msra.mxu0 %v641
    %719 = vmatpush.bf16.msra.mxu0 %v637
    %720 = vmatpush.bf16.msra.mxu0 %v633
    %721 = vmatpush.bf16.msra.mxu0 %v629
    %722 = vmatpush.bf16.msra.mxu0 %v625
    %723 = vmatpush.bf16.msra.mxu0 %v621
    %724 = vmatpush.bf16.msra.mxu0 %v617
    %725 = vmatmul.bf16.gmra.mxu0 %v485
    %v726 = vpop.f32.mrf.mxu0
    %v727 = vadd.f32 0.0, %v726
    %v728 = vpop.f32.mrf.mxu0
    %729 = vdwg.mxu0
    %v730 = vadd.f32 %v481, %v688
    %v731 = vadd.f32 %v482, %v701
    %v732 = vadd.f32 %v483, %v714
    %v733 = vadd.f32 %v484, %v727
    %v734 = vxor.u32 %v730, 2147483648
    %v735 = vxor.u32 %v731, 2147483648
    %v736 = vxor.u32 %v732, 2147483648
    %v737 = vmul.f32 %v734, 1.442695
    %v738 = vpow.pop %v737
    %v739 = vmul.f32 %v735, 1.442695
    %v740 = vpow.pop %v739
    %v741 = vmul.f32 %v736, 1.442695
    %v742 = vpow.pop %v741
    %v743 = vadd.f32 %v738, 1.0
    %v744 = vadd.f32 %v740, 1.0
    %v745 = vadd.f32 %v742, 1.0
    %v746 = vrcp.pop %v743
    %v747 = vmul.f32 %v743, %v746
    %v748 = vsub.f32 1.0, %v747
    %v749 = vmul.f32 %v746, %v748
    %v750 = vadd.f32 %v746, %v749
    %vm751 = vweird.f32 %v743
    %vm752 = vweird.f32 %v746
    %vm753 = vmor %vm751, %vm752
    %v754 = vsel %vm753, %v746, %v750
    %v755 = vand.u32 2147483647, %v743
    %vm756 = vcmp.eq.f32.partialorder %v755, 8.507059e+37
    %v757 = vand.u32 %v743, 2147483648
    %v758 = vor.u32 1.1754944e-38, %v757
    %v759 = vsel %vm756, %v758, %v754
    %v760 = vmul.f32 1.0, %v759
    %v761 = vrcp.pop %v744
    %v762 = vmul.f32 %v744, %v761
    %v763 = vsub.f32 1.0, %v762
    %v764 = vmul.f32 %v761, %v763
    %v765 = vadd.f32 %v761, %v764
    %vm766 = vweird.f32 %v744
    %vm767 = vweird.f32 %v761
    %vm768 = vmor %vm766, %vm767
    %v769 = vsel %vm768, %v761, %v765
    %v770 = vand.u32 2147483647, %v744
    %vm771 = vcmp.eq.f32.partialorder %v770, 8.507059e+37
    %v772 = vand.u32 %v744, 2147483648
    %v773 = vor.u32 1.1754944e-38, %v772
    %v774 = vsel %vm771, %v773, %v769
    %v775 = vmul.f32 1.0, %v774
    %v776 = vrcp.pop %v745
    %v777 = vmul.f32 %v745, %v776
    %v778 = vsub.f32 1.0, %v777
    %v779 = vmul.f32 %v776, %v778
    %v780 = vadd.f32 %v776, %v779
    %vm781 = vweird.f32 %v745
    %vm782 = vweird.f32 %v776
    %vm783 = vmor %vm781, %vm782
    %v784 = vsel %vm783, %v776, %v780
    %v785 = vand.u32 2147483647, %v745
    %vm786 = vcmp.eq.f32.partialorder %v785, 8.507059e+37
    %v787 = vand.u32 %v745, 2147483648
    %v788 = vor.u32 1.1754944e-38, %v787
    %v789 = vsel %vm786, %v788, %v784
    %v790 = vmul.f32 1.0, %v789
    %v791 = vtanh.pop %v733
    %v792 = vmul.f32 %v775, %v480
    %v793 = vmul.f32 %v760, %v791
    %v794 = vadd.f32 %v792, %v793
    %v795 = vtanh.pop %v794
    %v796 = vmul.f32 %v790, %v795
    %797 = vst [vmem:[#allocation2] sm:$0xff] %v796
    %v798 = vld [vmem:[#allocation3 + $0x20] sm:$0xff]
    %v799 = vld [vmem:[#allocation3 + $0x28] sm:$0xff]
    %v800 = vld [vmem:[#allocation3 + $0x30] sm:$0xff]
    %v801 = vld [vmem:[#allocation3 + $0x38] sm:$0xff]
    %v802 = vpack.c.bf16 %v796, %v796
    %v803 = vld [vmem:[#allocation4] sm:$0xff]
    %v804 = vld [vmem:[#allocation4 + $0x8] sm:$0xff]
    %v805 = vld [vmem:[#allocation4 + $0x10] sm:$0xff]
    %v806 = vld [vmem:[#allocation4 + $0x18] sm:$0xff]
    %v807 = vld [vmem:[#allocation4 + $0x20] sm:$0xff]
    %v808 = vld [vmem:[#allocation4 + $0x28] sm:$0xff]
    %v809 = vld [vmem:[#allocation4 + $0x30] sm:$0xff]
    %v810 = vld [vmem:[#allocation4 + $0x38] sm:$0xff]
    %v811 = vld [vmem:[#allocation4 + $0x40] sm:$0xff]
    %v812 = vld [vmem:[#allocation4 + $0x48] sm:$0xff]
    %v813 = vld [vmem:[#allocation4 + $0x50] sm:$0xff]
    %v814 = vld [vmem:[#allocation4 + $0x58] sm:$0xff]
    %v815 = vld [vmem:[#allocation4 + $0x60] sm:$0xff]
    %v816 = vld [vmem:[#allocation4 + $0x68] sm:$0xff]
    %v817 = vld [vmem:[#allocation4 + $0x70] sm:$0xff]
    %v818 = vld [vmem:[#allocation4 + $0x78] sm:$0xff]
    %v819 = vld [vmem:[#allocation4 + $0x80] sm:$0xff]
    %v820 = vld [vmem:[#allocation4 + $0x88] sm:$0xff]
    %v821 = vld [vmem:[#allocation4 + $0x90] sm:$0xff]
    %v822 = vld [vmem:[#allocation4 + $0x98] sm:$0xff]
    %v823 = vld [vmem:[#allocation4 + $0xa0] sm:$0xff]
    %v824 = vld [vmem:[#allocation4 + $0xa8] sm:$0xff]
    %v825 = vld [vmem:[#allocation4 + $0xb0] sm:$0xff]
    %v826 = vld [vmem:[#allocation4 + $0xb8] sm:$0xff]
    %v827 = vld [vmem:[#allocation4 + $0xc0] sm:$0xff]
    %v828 = vld [vmem:[#allocation4 + $0xc8] sm:$0xff]
    %v829 = vld [vmem:[#allocation4 + $0xd0] sm:$0xff]
    %v830 = vld [vmem:[#allocation4 + $0xd8] sm:$0xff]
    %v831 = vld [vmem:[#allocation4 + $0xe0] sm:$0xff]
    %v832 = vld [vmem:[#allocation4 + $0xe8] sm:$0xff]
    %v833 = vld [vmem:[#allocation4 + $0xf0] sm:$0xff]
    %v834 = vld [vmem:[#allocation4 + $0xf8] sm:$0xff]
    %v867 = vunpack.c.l.b16 %v803
    %v868 = vunpack.c.h.b16 %v803
    %v869 = vunpack.c.l.b16 %v804
    %v870 = vunpack.c.h.b16 %v804
    %v871 = vunpack.c.l.b16 %v805
    %v872 = vunpack.c.h.b16 %v805
    %v873 = vunpack.c.l.b16 %v806
    %v874 = vunpack.c.h.b16 %v806
    %v875 = vunpack.c.l.b16 %v807
    %v876 = vunpack.c.h.b16 %v807
    %v877 = vunpack.c.l.b16 %v808
    %v878 = vunpack.c.h.b16 %v808
    %v879 = vunpack.c.l.b16 %v809
    %v880 = vunpack.c.h.b16 %v809
    %v881 = vunpack.c.l.b16 %v810
    %v882 = vunpack.c.h.b16 %v810
    %v883 = vunpack.c.l.b16 %v811
    %v884 = vunpack.c.h.b16 %v811
    %v885 = vunpack.c.l.b16 %v812
    %v886 = vunpack.c.h.b16 %v812
    %v887 = vunpack.c.l.b16 %v813
    %v888 = vunpack.c.h.b16 %v813
    %v889 = vunpack.c.l.b16 %v814
    %v890 = vunpack.c.h.b16 %v814
    %v891 = vunpack.c.l.b16 %v815
    %v892 = vunpack.c.h.b16 %v815
    %v893 = vunpack.c.l.b16 %v816
    %v894 = vunpack.c.h.b16 %v816
    %v895 = vunpack.c.l.b16 %v817
    %v896 = vunpack.c.h.b16 %v817
    %v897 = vunpack.c.l.b16 %v818
    %v898 = vunpack.c.h.b16 %v818
    %v899 = vunpack.c.l.b16 %v819
    %v900 = vunpack.c.h.b16 %v819
    %v901 = vunpack.c.l.b16 %v820
    %v902 = vunpack.c.h.b16 %v820
    %v903 = vunpack.c.l.b16 %v821
    %v904 = vunpack.c.h.b16 %v821
    %v905 = vunpack.c.l.b16 %v822
    %v906 = vunpack.c.h.b16 %v822
    %v907 = vunpack.c.l.b16 %v823
    %v908 = vunpack.c.h.b16 %v823
    %v909 = vunpack.c.l.b16 %v824
    %v910 = vunpack.c.h.b16 %v824
    %v911 = vunpack.c.l.b16 %v825
    %v912 = vunpack.c.h.b16 %v825
    %v913 = vunpack.c.l.b16 %v826
    %v914 = vunpack.c.h.b16 %v826
    %v915 = vunpack.c.l.b16 %v827
    %v916 = vunpack.c.h.b16 %v827
    %v917 = vunpack.c.l.b16 %v828
    %v918 = vunpack.c.h.b16 %v828
    %v919 = vunpack.c.l.b16 %v829
    %v920 = vunpack.c.h.b16 %v829
    %v921 = vunpack.c.l.b16 %v830
    %v922 = vunpack.c.h.b16 %v830
    %v923 = vunpack.c.l.b16 %v831
    %v924 = vunpack.c.h.b16 %v831
    %v925 = vunpack.c.l.b16 %v832
    %v926 = vunpack.c.h.b16 %v832
    %v927 = vunpack.c.l.b16 %v833
    %v928 = vunpack.c.h.b16 %v833
    %v929 = vunpack.c.l.b16 %v834
    %v930 = vunpack.c.h.b16 %v834
    %v931 = vpack.c.b16 %v871, %v867
    %v932 = vpack.c.b16 %v872, %v868
    %v933 = vpack.c.b16 %v873, %v869
    %v934 = vpack.c.b16 %v874, %v870
    %v935 = vpack.c.b16 %v879, %v875
    %v936 = vpack.c.b16 %v880, %v876
    %v937 = vpack.c.b16 %v881, %v877
    %v938 = vpack.c.b16 %v882, %v878
    %v939 = vpack.c.b16 %v887, %v883
    %v940 = vpack.c.b16 %v888, %v884
    %v941 = vpack.c.b16 %v889, %v885
    %v942 = vpack.c.b16 %v890, %v886
    %v943 = vpack.c.b16 %v895, %v891
    %v944 = vpack.c.b16 %v896, %v892
    %v945 = vpack.c.b16 %v897, %v893
    %v946 = vpack.c.b16 %v898, %v894
    %v947 = vpack.c.b16 %v903, %v899
    %v948 = vpack.c.b16 %v904, %v900
    %v949 = vpack.c.b16 %v905, %v901
    %v950 = vpack.c.b16 %v906, %v902
    %v951 = vpack.c.b16 %v911, %v907
    %v952 = vpack.c.b16 %v912, %v908
    %v953 = vpack.c.b16 %v913, %v909
    %v954 = vpack.c.b16 %v914, %v910
    %v955 = vpack.c.b16 %v919, %v915
    %v956 = vpack.c.b16 %v920, %v916
    %v957 = vpack.c.b16 %v921, %v917
    %v958 = vpack.c.b16 %v922, %v918
    %v959 = vpack.c.b16 %v927, %v923
    %v960 = vpack.c.b16 %v928, %v924
    %v961 = vpack.c.b16 %v929, %v925
    %v962 = vpack.c.b16 %v930, %v926
    %995 = vmatpush.bf16.msra.mxu0 %v959
    %996 = vmatpush.bf16.msra.mxu0 %v955
    %997 = vmatpush.bf16.msra.mxu0 %v951
    %998 = vmatpush.bf16.msra.mxu0 %v947
    %999 = vmatpush.bf16.msra.mxu0 %v943
    %1000 = vmatpush.bf16.msra.mxu0 %v939
    %1001 = vmatpush.bf16.msra.mxu0 %v935
    %1002 = vmatpush.bf16.msra.mxu0 %v931
    %1003 = vmatmul.bf16.gmra.mxu0 %v802
    %v1004 = vpop.f32.mrf.mxu0
    %v1005 = vadd.f32 0.0, %v1004
    %v1006 = vpop.f32.mrf.mxu0
    %1007 = vdwg.mxu0
    %1008 = vmatpush.bf16.msra.mxu0 %v960
    %1009 = vmatpush.bf16.msra.mxu0 %v956
    %1010 = vmatpush.bf16.msra.mxu0 %v952
    %1011 = vmatpush.bf16.msra.mxu0 %v948
    %1012 = vmatpush.bf16.msra.mxu0 %v944
    %1013 = vmatpush.bf16.msra.mxu0 %v940
    %1014 = vmatpush.bf16.msra.mxu0 %v936
    %1015 = vmatpush.bf16.msra.mxu0 %v932
    %1016 = vmatmul.bf16.gmra.mxu0 %v802
    %v1017 = vpop.f32.mrf.mxu0
    %v1018 = vadd.f32 0.0, %v1017
    %v1019 = vpop.f32.mrf.mxu0
    %1020 = vdwg.mxu0
    %1021 = vmatpush.bf16.msra.mxu0 %v961
    %1022 = vmatpush.bf16.msra.mxu0 %v957
    %1023 = vmatpush.bf16.msra.mxu0 %v953
    %1024 = vmatpush.bf16.msra.mxu0 %v949
    %1025 = vmatpush.bf16.msra.mxu0 %v945
    %1026 = vmatpush.bf16.msra.mxu0 %v941
    %1027 = vmatpush.bf16.msra.mxu0 %v937
    %1028 = vmatpush.bf16.msra.mxu0 %v933
    %1029 = vmatmul.bf16.gmra.mxu0 %v802
    %v1030 = vpop.f32.mrf.mxu0
    %v1031 = vadd.f32 0.0, %v1030
    %v1032 = vpop.f32.mrf.mxu0
    %1033 = vdwg.mxu0
    %1034 = vmatpush.bf16.msra.mxu0 %v962
    %1035 = vmatpush.bf16.msra.mxu0 %v958
    %1036 = vmatpush.bf16.msra.mxu0 %v954
    %1037 = vmatpush.bf16.msra.mxu0 %v950
    %1038 = vmatpush.bf16.msra.mxu0 %v946
    %1039 = vmatpush.bf16.msra.mxu0 %v942
    %1040 = vmatpush.bf16.msra.mxu0 %v938
    %1041 = vmatpush.bf16.msra.mxu0 %v934
    %1042 = vmatmul.bf16.gmra.mxu0 %v802
    %v1043 = vpop.f32.mrf.mxu0
    %v1044 = vadd.f32 0.0, %v1043
    %v1045 = vpop.f32.mrf.mxu0
    %1046 = vdwg.mxu0
    %v1047 = vadd.f32 %v798, %v1005
    %v1048 = vadd.f32 %v799, %v1018
    %v1049 = vadd.f32 %v800, %v1031
    %v1050 = vadd.f32 %v801, %v1044
    %v1051 = vxor.u32 %v1047, 2147483648
    %v1052 = vxor.u32 %v1048, 2147483648
    %v1053 = vxor.u32 %v1049, 2147483648
    %v1054 = vmul.f32 %v1051, 1.442695
    %v1055 = vpow.pop %v1054
    %v1056 = vmul.f32 %v1052, 1.442695
    %v1057 = vpow.pop %v1056
    %v1058 = vmul.f32 %v1053, 1.442695
    %v1059 = vpow.pop %v1058
    %v1060 = vadd.f32 %v1055, 1.0
    %v1061 = vadd.f32 %v1057, 1.0
    %v1062 = vadd.f32 %v1059, 1.0
    %v1063 = vrcp.pop %v1060
    %v1064 = vmul.f32 %v1060, %v1063
    %v1065 = vsub.f32 1.0, %v1064
    %v1066 = vmul.f32 %v1063, %v1065
    %v1067 = vadd.f32 %v1063, %v1066
    %vm1068 = vweird.f32 %v1060
    %vm1069 = vweird.f32 %v1063
    %vm1070 = vmor %vm1068, %vm1069
    %v1071 = vsel %vm1070, %v1063, %v1067
    %v1072 = vand.u32 2147483647, %v1060
    %vm1073 = vcmp.eq.f32.partialorder %v1072, 8.507059e+37
    %v1074 = vand.u32 %v1060, 2147483648
    %v1075 = vor.u32 1.1754944e-38, %v1074
    %v1076 = vsel %vm1073, %v1075, %v1071
    %v1077 = vmul.f32 1.0, %v1076
    %v1078 = vrcp.pop %v1061
    %v1079 = vmul.f32 %v1061, %v1078
    %v1080 = vsub.f32 1.0, %v1079
    %v1081 = vmul.f32 %v1078, %v1080
    %v1082 = vadd.f32 %v1078, %v1081
    %vm1083 = vweird.f32 %v1061
    %vm1084 = vweird.f32 %v1078
    %vm1085 = vmor %vm1083, %vm1084
    %v1086 = vsel %vm1085, %v1078, %v1082
    %v1087 = vand.u32 2147483647, %v1061
    %vm1088 = vcmp.eq.f32.partialorder %v1087, 8.507059e+37
    %v1089 = vand.u32 %v1061, 2147483648
    %v1090 = vor.u32 1.1754944e-38, %v1089
    %v1091 = vsel %vm1088, %v1090, %v1086
    %v1092 = vmul.f32 1.0, %v1091
    %v1093 = vrcp.pop %v1062
    %v1094 = vmul.f32 %v1062, %v1093
    %v1095 = vsub.f32 1.0, %v1094
    %v1096 = vmul.f32 %v1093, %v1095
    %v1097 = vadd.f32 %v1093, %v1096
    %vm1098 = vweird.f32 %v1062
    %vm1099 = vweird.f32 %v1093
    %vm1100 = vmor %vm1098, %vm1099
    %v1101 = vsel %vm1100, %v1093, %v1097
    %v1102 = vand.u32 2147483647, %v1062
    %vm1103 = vcmp.eq.f32.partialorder %v1102, 8.507059e+37
    %v1104 = vand.u32 %v1062, 2147483648
    %v1105 = vor.u32 1.1754944e-38, %v1104
    %v1106 = vsel %vm1103, %v1105, %v1101
    %v1107 = vmul.f32 1.0, %v1106
    %v1108 = vtanh.pop %v1050
    %v1109 = vmul.f32 %v1092, %v794
    %v1110 = vmul.f32 %v1077, %v1108
    %v1111 = vadd.f32 %v1109, %v1110
    %v1112 = vtanh.pop %v1111
    %v1113 = vmul.f32 %v1107, %v1112
    %1114 = vst [vmem:[#allocation2 + $0x8] sm:$0xff] %v1113
    %v1115 = vld [vmem:[#allocation3 + $0x40] sm:$0xff]
    %v1116 = vld [vmem:[#allocation3 + $0x48] sm:$0xff]
    %v1117 = vld [vmem:[#allocation3 + $0x50] sm:$0xff]
    %v1118 = vld [vmem:[#allocation3 + $0x58] sm:$0xff]
    %v1119 = vpack.c.bf16 %v1113, %v1113
    %v1120 = vld [vmem:[#allocation4] sm:$0xff]
    %v1121 = vld [vmem:[#allocation4 + $0x8] sm:$0xff]
    %v1122 = vld [vmem:[#allocation4 + $0x10] sm:$0xff]
    %v1123 = vld [vmem:[#allocation4 + $0x18] sm:$0xff]
    %v1124 = vld [vmem:[#allocation4 + $0x20] sm:$0xff]
    %v1125 = vld [vmem:[#allocation4 + $0x28] sm:$0xff]
    %v1126 = vld [vmem:[#allocation4 + $0x30] sm:$0xff]
    %v1127 = vld [vmem:[#allocation4 + $0x38] sm:$0xff]
    %v1128 = vld [vmem:[#allocation4 + $0x40] sm:$0xff]
    %v1129 = vld [vmem:[#allocation4 + $0x48] sm:$0xff]
    %v1130 = vld [vmem:[#allocation4 + $0x50] sm:$0xff]
    %v1131 = vld [vmem:[#allocation4 + $0x58] sm:$0xff]
    %v1132 = vld [vmem:[#allocation4 + $0x60] sm:$0xff]
    %v1133 = vld [vmem:[#allocation4 + $0x68] sm:$0xff]
    %v1134 = vld [vmem:[#allocation4 + $0x70] sm:$0xff]
    %v1135 = vld [vmem:[#allocation4 + $0x78] sm:$0xff]
    %v1136 = vld [vmem:[#allocation4 + $0x80] sm:$0xff]
    %v1137 = vld [vmem:[#allocation4 + $0x88] sm:$0xff]
    %v1138 = vld [vmem:[#allocation4 + $0x90] sm:$0xff]
    %v1139 = vld [vmem:[#allocation4 + $0x98] sm:$0xff]
    %v1140 = vld [vmem:[#allocation4 + $0xa0] sm:$0xff]
    %v1141 = vld [vmem:[#allocation4 + $0xa8] sm:$0xff]
    %v1142 = vld [vmem:[#allocation4 + $0xb0] sm:$0xff]
    %v1143 = vld [vmem:[#allocation4 + $0xb8] sm:$0xff]
    %v1144 = vld [vmem:[#allocation4 + $0xc0] sm:$0xff]
    %v1145 = vld [vmem:[#allocation4 + $0xc8] sm:$0xff]
    %v1146 = vld [vmem:[#allocation4 + $0xd0] sm:$0xff]
    %v1147 = vld [vmem:[#allocation4 + $0xd8] sm:$0xff]
    %v1148 = vld [vmem:[#allocation4 + $0xe0] sm:$0xff]
    %v1149 = vld [vmem:[#allocation4 + $0xe8] sm:$0xff]
    %v1150 = vld [vmem:[#allocation4 + $0xf0] sm:$0xff]
    %v1151 = vld [vmem:[#allocation4 + $0xf8] sm:$0xff]
    %v1184 = vunpack.c.l.b16 %v1120
    %v1185 = vunpack.c.h.b16 %v1120
    %v1186 = vunpack.c.l.b16 %v1121
    %v1187 = vunpack.c.h.b16 %v1121
    %v1188 = vunpack.c.l.b16 %v1122
    %v1189 = vunpack.c.h.b16 %v1122
    %v1190 = vunpack.c.l.b16 %v1123
    %v1191 = vunpack.c.h.b16 %v1123
    %v1192 = vunpack.c.l.b16 %v1124
    %v1193 = vunpack.c.h.b16 %v1124
    %v1194 = vunpack.c.l.b16 %v1125
    %v1195 = vunpack.c.h.b16 %v1125
    %v1196 = vunpack.c.l.b16 %v1126
    %v1197 = vunpack.c.h.b16 %v1126
    %v1198 = vunpack.c.l.b16 %v1127
    %v1199 = vunpack.c.h.b16 %v1127
    %v1200 = vunpack.c.l.b16 %v1128
    %v1201 = vunpack.c.h.b16 %v1128
    %v1202 = vunpack.c.l.b16 %v1129
    %v1203 = vunpack.c.h.b16 %v1129
    %v1204 = vunpack.c.l.b16 %v1130
    %v1205 = vunpack.c.h.b16 %v1130
    %v1206 = vunpack.c.l.b16 %v1131
    %v1207 = vunpack.c.h.b16 %v1131
    %v1208 = vunpack.c.l.b16 %v1132
    %v1209 = vunpack.c.h.b16 %v1132
    %v1210 = vunpack.c.l.b16 %v1133
    %v1211 = vunpack.c.h.b16 %v1133
    %v1212 = vunpack.c.l.b16 %v1134
    %v1213 = vunpack.c.h.b16 %v1134
    %v1214 = vunpack.c.l.b16 %v1135
    %v1215 = vunpack.c.h.b16 %v1135
    %v1216 = vunpack.c.l.b16 %v1136
    %v1217 = vunpack.c.h.b16 %v1136
    %v1218 = vunpack.c.l.b16 %v1137
    %v1219 = vunpack.c.h.b16 %v1137
    %v1220 = vunpack.c.l.b16 %v1138
    %v1221 = vunpack.c.h.b16 %v1138
    %v1222 = vunpack.c.l.b16 %v1139
    %v1223 = vunpack.c.h.b16 %v1139
    %v1224 = vunpack.c.l.b16 %v1140
    %v1225 = vunpack.c.h.b16 %v1140
    %v1226 = vunpack.c.l.b16 %v1141
    %v1227 = vunpack.c.h.b16 %v1141
    %v1228 = vunpack.c.l.b16 %v1142
    %v1229 = vunpack.c.h.b16 %v1142
    %v1230 = vunpack.c.l.b16 %v1143
    %v1231 = vunpack.c.h.b16 %v1143
    %v1232 = vunpack.c.l.b16 %v1144
    %v1233 = vunpack.c.h.b16 %v1144
    %v1234 = vunpack.c.l.b16 %v1145
    %v1235 = vunpack.c.h.b16 %v1145
    %v1236 = vunpack.c.l.b16 %v1146
    %v1237 = vunpack.c.h.b16 %v1146
    %v1238 = vunpack.c.l.b16 %v1147
    %v1239 = vunpack.c.h.b16 %v1147
    %v1240 = vunpack.c.l.b16 %v1148
    %v1241 = vunpack.c.h.b16 %v1148
    %v1242 = vunpack.c.l.b16 %v1149
    %v1243 = vunpack.c.h.b16 %v1149
    %v1244 = vunpack.c.l.b16 %v1150
    %v1245 = vunpack.c.h.b16 %v1150
    %v1246 = vunpack.c.l.b16 %v1151
    %v1247 = vunpack.c.h.b16 %v1151
    %v1248 = vpack.c.b16 %v1188, %v1184
    %v1249 = vpack.c.b16 %v1189, %v1185
    %v1250 = vpack.c.b16 %v1190, %v1186
    %v1251 = vpack.c.b16 %v1191, %v1187
    %v1252 = vpack.c.b16 %v1196, %v1192
    %v1253 = vpack.c.b16 %v1197, %v1193
    %v1254 = vpack.c.b16 %v1198, %v1194
    %v1255 = vpack.c.b16 %v1199, %v1195
    %v1256 = vpack.c.b16 %v1204, %v1200
    %v1257 = vpack.c.b16 %v1205, %v1201
    %v1258 = vpack.c.b16 %v1206, %v1202
    %v1259 = vpack.c.b16 %v1207, %v1203
    %v1260 = vpack.c.b16 %v1212, %v1208
    %v1261 = vpack.c.b16 %v1213, %v1209
    %v1262 = vpack.c.b16 %v1214, %v1210
    %v1263 = vpack.c.b16 %v1215, %v1211
    %v1264 = vpack.c.b16 %v1220, %v1216
    %v1265 = vpack.c.b16 %v1221, %v1217
    %v1266 = vpack.c.b16 %v1222, %v1218
    %v1267 = vpack.c.b16 %v1223, %v1219
    %v1268 = vpack.c.b16 %v1228, %v1224
    %v1269 = vpack.c.b16 %v1229, %v1225
    %v1270 = vpack.c.b16 %v1230, %v1226
    %v1271 = vpack.c.b16 %v1231, %v1227
    %v1272 = vpack.c.b16 %v1236, %v1232
    %v1273 = vpack.c.b16 %v1237, %v1233
    %v1274 = vpack.c.b16 %v1238, %v1234
    %v1275 = vpack.c.b16 %v1239, %v1235
    %v1276 = vpack.c.b16 %v1244, %v1240
    %v1277 = vpack.c.b16 %v1245, %v1241
    %v1278 = vpack.c.b16 %v1246, %v1242
    %v1279 = vpack.c.b16 %v1247, %v1243
    %1312 = vmatpush.bf16.msra.mxu0 %v1276
    %1313 = vmatpush.bf16.msra.mxu0 %v1272
    %1314 = vmatpush.bf16.msra.mxu0 %v1268
    %1315 = vmatpush.bf16.msra.mxu0 %v1264
    %1316 = vmatpush.bf16.msra.mxu0 %v1260
    %1317 = vmatpush.bf16.msra.mxu0 %v1256
    %1318 = vmatpush.bf16.msra.mxu0 %v1252
    %1319 = vmatpush.bf16.msra.mxu0 %v1248
    %1320 = vmatmul.bf16.gmra.mxu0 %v1119
    %v1321 = vpop.f32.mrf.mxu0
    %v1322 = vadd.f32 0.0, %v1321
    %v1323 = vpop.f32.mrf.mxu0
    %1324 = vdwg.mxu0
    %1325 = vmatpush.bf16.msra.mxu0 %v1277
    %1326 = vmatpush.bf16.msra.mxu0 %v1273
    %1327 = vmatpush.bf16.msra.mxu0 %v1269
    %1328 = vmatpush.bf16.msra.mxu0 %v1265
    %1329 = vmatpush.bf16.msra.mxu0 %v1261
    %1330 = vmatpush.bf16.msra.mxu0 %v1257
    %1331 = vmatpush.bf16.msra.mxu0 %v1253
    %1332 = vmatpush.bf16.msra.mxu0 %v1249
    %1333 = vmatmul.bf16.gmra.mxu0 %v1119
    %v1334 = vpop.f32.mrf.mxu0
    %v1335 = vadd.f32 0.0, %v1334
    %v1336 = vpop.f32.mrf.mxu0
    %1337 = vdwg.mxu0
    %1338 = vmatpush.bf16.msra.mxu0 %v1278
    %1339 = vmatpush.bf16.msra.mxu0 %v1274
    %1340 = vmatpush.bf16.msra.mxu0 %v1270
    %1341 = vmatpush.bf16.msra.mxu0 %v1266
    %1342 = vmatpush.bf16.msra.mxu0 %v1262
    %1343 = vmatpush.bf16.msra.mxu0 %v1258
    %1344 = vmatpush.bf16.msra.mxu0 %v1254
    %1345 = vmatpush.bf16.msra.mxu0 %v1250
    %1346 = vmatmul.bf16.gmra.mxu0 %v1119
    %v1347 = vpop.f32.mrf.mxu0
    %v1348 = vadd.f32 0.0, %v1347
    %v1349 = vpop.f32.mrf.mxu0
    %1350 = vdwg.mxu0
    %1351 = vmatpush.bf16.msra.mxu0 %v1279
    %1352 = vmatpush.bf16.msra.mxu0 %v1275
    %1353 = vmatpush.bf16.msra.mxu0 %v1271
    %1354 = vmatpush.bf16.msra.mxu0 %v1267
    %1355 = vmatpush.bf16.msra.mxu0 %v1263
    %1356 = vmatpush.bf16.msra.mxu0 %v1259
    %1357 = vmatpush.bf16.msra.mxu0 %v1255
    %1358 = vmatpush.bf16.msra.mxu0 %v1251
    %1359 = vmatmul.bf16.gmra.mxu0 %v1119
    %v1360 = vpop.f32.mrf.mxu0
    %v1361 = vadd.f32 0.0, %v1360
    %v1362 = vpop.f32.mrf.mxu0
    %1363 = vdwg.mxu0
    %v1364 = vadd.f32 %v1115, %v1322
    %v1365 = vadd.f32 %v1116, %v1335
    %v1366 = vadd.f32 %v1117, %v1348
    %v1367 = vadd.f32 %v1118, %v1361
    %v1368 = vxor.u32 %v1364, 2147483648
    %v1369 = vxor.u32 %v1365, 2147483648
    %v1370 = vxor.u32 %v1366, 2147483648
    %v1371 = vmul.f32 %v1368, 1.442695
    %v1372 = vpow.pop %v1371
    %v1373 = vmul.f32 %v1369, 1.442695
    %v1374 = vpow.pop %v1373
    %v1375 = vmul.f32 %v1370, 1.442695
    %v1376 = vpow.pop %v1375
    %v1377 = vadd.f32 %v1372, 1.0
    %v1378 = vadd.f32 %v1374, 1.0
    %v1379 = vadd.f32 %v1376, 1.0
    %v1380 = vrcp.pop %v1377
    %v1381 = vmul.f32 %v1377, %v1380
    %v1382 = vsub.f32 1.0, %v1381
    %v1383 = vmul.f32 %v1380, %v1382
    %v1384 = vadd.f32 %v1380, %v1383
    %vm1385 = vweird.f32 %v1377
    %vm1386 = vweird.f32 %v1380
    %vm1387 = vmor %vm1385, %vm1386
    %v1388 = vsel %vm1387, %v1380, %v1384
    %v1389 = vand.u32 2147483647, %v1377
    %vm1390 = vcmp.eq.f32.partialorder %v1389, 8.507059e+37
    %v1391 = vand.u32 %v1377, 2147483648
    %v1392 = vor.u32 1.1754944e-38, %v1391
    %v1393 = vsel %vm1390, %v1392, %v1388
    %v1394 = vmul.f32 1.0, %v1393
    %v1395 = vrcp.pop %v1378
    %v1396 = vmul.f32 %v1378, %v1395
    %v1397 = vsub.f32 1.0, %v1396
    %v1398 = vmul.f32 %v1395, %v1397
    %v1399 = vadd.f32 %v1395, %v1398
    %vm1400 = vweird.f32 %v1378
    %vm1401 = vweird.f32 %v1395
    %vm1402 = vmor %vm1400, %vm1401
    %v1403 = vsel %vm1402, %v1395, %v1399
    %v1404 = vand.u32 2147483647, %v1378
    %vm1405 = vcmp.eq.f32.partialorder %v1404, 8.507059e+37
    %v1406 = vand.u32 %v1378, 2147483648
    %v1407 = vor.u32 1.1754944e-38, %v1406
    %v1408 = vsel %vm1405, %v1407, %v1403
    %v1409 = vmul.f32 1.0, %v1408
    %v1410 = vrcp.pop %v1379
    %v1411 = vmul.f32 %v1379, %v1410
    %v1412 = vsub.f32 1.0, %v1411
    %v1413 = vmul.f32 %v1410, %v1412
    %v1414 = vadd.f32 %v1410, %v1413
    %vm1415 = vweird.f32 %v1379
    %vm1416 = vweird.f32 %v1410
    %vm1417 = vmor %vm1415, %vm1416
    %v1418 = vsel %vm1417, %v1410, %v1414
    %v1419 = vand.u32 2147483647, %v1379
    %vm1420 = vcmp.eq.f32.partialorder %v1419, 8.507059e+37
    %v1421 = vand.u32 %v1379, 2147483648
    %v1422 = vor.u32 1.1754944e-38, %v1421
    %v1423 = vsel %vm1420, %v1422, %v1418
    %v1424 = vmul.f32 1.0, %v1423
    %v1425 = vtanh.pop %v1367
    %v1426 = vmul.f32 %v1409, %v1111
    %v1427 = vmul.f32 %v1394, %v1425
    %v1428 = vadd.f32 %v1426, %v1427
    %v1429 = vtanh.pop %v1428
    %v1430 = vmul.f32 %v1424, %v1429
    %1431 = vst [vmem:[#allocation2 + $0x10] sm:$0xff] %v1430
    %v1432 = vld [vmem:[#allocation3 + $0x60] sm:$0xff]
    %v1433 = vld [vmem:[#allocation3 + $0x68] sm:$0xff]
    %v1434 = vld [vmem:[#allocation3 + $0x70] sm:$0xff]
    %v1435 = vld [vmem:[#allocation3 + $0x78] sm:$0xff]
    %v1436 = vpack.c.bf16 %v1430, %v1430
    %v1437 = vld [vmem:[#allocation4] sm:$0xff]
    %v1438 = vld [vmem:[#allocation4 + $0x8] sm:$0xff]
    %v1439 = vld [vmem:[#allocation4 + $0x10] sm:$0xff]
    %v1440 = vld [vmem:[#allocation4 + $0x18] sm:$0xff]
    %v1441 = vld [vmem:[#allocation4 + $0x20] sm:$0xff]
    %v1442 = vld [vmem:[#allocation4 + $0x28] sm:$0xff]
    %v1443 = vld [vmem:[#allocation4 + $0x30] sm:$0xff]
    %v1444 = vld [vmem:[#allocation4 + $0x38] sm:$0xff]
    %v1445 = vld [vmem:[#allocation4 + $0x40] sm:$0xff]
    %v1446 = vld [vmem:[#allocation4 + $0x48] sm:$0xff]
    %v1447 = vld [vmem:[#allocation4 + $0x50] sm:$0xff]
    %v1448 = vld [vmem:[#allocation4 + $0x58] sm:$0xff]
    %v1449 = vld [vmem:[#allocation4 + $0x60] sm:$0xff]
    %v1450 = vld [vmem:[#allocation4 + $0x68] sm:$0xff]
    %v1451 = vld [vmem:[#allocation4 + $0x70] sm:$0xff]
    %v1452 = vld [vmem:[#allocation4 + $0x78] sm:$0xff]
    %v1453 = vld [vmem:[#allocation4 + $0x80] sm:$0xff]
    %v1454 = vld [vmem:[#allocation4 + $0x88] sm:$0xff]
    %v1455 = vld [vmem:[#allocation4 + $0x90] sm:$0xff]
    %v1456 = vld [vmem:[#allocation4 + $0x98] sm:$0xff]
    %v1457 = vld [vmem:[#allocation4 + $0xa0] sm:$0xff]
    %v1458 = vld [vmem:[#allocation4 + $0xa8] sm:$0xff]
    %v1459 = vld [vmem:[#allocation4 + $0xb0] sm:$0xff]
    %v1460 = vld [vmem:[#allocation4 + $0xb8] sm:$0xff]
    %v1461 = vld [vmem:[#allocation4 + $0xc0] sm:$0xff]
    %v1462 = vld [vmem:[#allocation4 + $0xc8] sm:$0xff]
    %v1463 = vld [vmem:[#allocation4 + $0xd0] sm:$0xff]
    %v1464 = vld [vmem:[#allocation4 + $0xd8] sm:$0xff]
    %v1465 = vld [vmem:[#allocation4 + $0xe0] sm:$0xff]
    %v1466 = vld [vmem:[#allocation4 + $0xe8] sm:$0xff]
    %v1467 = vld [vmem:[#allocation4 + $0xf0] sm:$0xff]
    %v1468 = vld [vmem:[#allocation4 + $0xf8] sm:$0xff]
    %v1501 = vunpack.c.l.b16 %v1437
    %v1502 = vunpack.c.h.b16 %v1437
    %v1503 = vunpack.c.l.b16 %v1438
    %v1504 = vunpack.c.h.b16 %v1438
    %v1505 = vunpack.c.l.b16 %v1439
    %v1506 = vunpack.c.h.b16 %v1439
    %v1507 = vunpack.c.l.b16 %v1440
    %v1508 = vunpack.c.h.b16 %v1440
    %v1509 = vunpack.c.l.b16 %v1441
    %v1510 = vunpack.c.h.b16 %v1441
    %v1511 = vunpack.c.l.b16 %v1442
    %v1512 = vunpack.c.h.b16 %v1442
    %v1513 = vunpack.c.l.b16 %v1443
    %v1514 = vunpack.c.h.b16 %v1443
    %v1515 = vunpack.c.l.b16 %v1444
    %v1516 = vunpack.c.h.b16 %v1444
    %v1517 = vunpack.c.l.b16 %v1445
    %v1518 = vunpack.c.h.b16 %v1445
    %v1519 = vunpack.c.l.b16 %v1446
    %v1520 = vunpack.c.h.b16 %v1446
    %v1521 = vunpack.c.l.b16 %v1447
    %v1522 = vunpack.c.h.b16 %v1447
    %v1523 = vunpack.c.l.b16 %v1448
    %v1524 = vunpack.c.h.b16 %v1448
    %v1525 = vunpack.c.l.b16 %v1449
    %v1526 = vunpack.c.h.b16 %v1449
    %v1527 = vunpack.c.l.b16 %v1450
    %v1528 = vunpack.c.h.b16 %v1450
    %v1529 = vunpack.c.l.b16 %v1451
    %v1530 = vunpack.c.h.b16 %v1451
    %v1531 = vunpack.c.l.b16 %v1452
    %v1532 = vunpack.c.h.b16 %v1452
    %v1533 = vunpack.c.l.b16 %v1453
    %v1534 = vunpack.c.h.b16 %v1453
    %v1535 = vunpack.c.l.b16 %v1454
    %v1536 = vunpack.c.h.b16 %v1454
    %v1537 = vunpack.c.l.b16 %v1455
    %v1538 = vunpack.c.h.b16 %v1455
    %v1539 = vunpack.c.l.b16 %v1456
    %v1540 = vunpack.c.h.b16 %v1456
    %v1541 = vunpack.c.l.b16 %v1457
    %v1542 = vunpack.c.h.b16 %v1457
    %v1543 = vunpack.c.l.b16 %v1458
    %v1544 = vunpack.c.h.b16 %v1458
    %v1545 = vunpack.c.l.b16 %v1459
    %v1546 = vunpack.c.h.b16 %v1459
    %v1547 = vunpack.c.l.b16 %v1460
    %v1548 = vunpack.c.h.b16 %v1460
    %v1549 = vunpack.c.l.b16 %v1461
    %v1550 = vunpack.c.h.b16 %v1461
    %v1551 = vunpack.c.l.b16 %v1462
    %v1552 = vunpack.c.h.b16 %v1462
    %v1553 = vunpack.c.l.b16 %v1463
    %v1554 = vunpack.c.h.b16 %v1463
    %v1555 = vunpack.c.l.b16 %v1464
    %v1556 = vunpack.c.h.b16 %v1464
    %v1557 = vunpack.c.l.b16 %v1465
    %v1558 = vunpack.c.h.b16 %v1465
    %v1559 = vunpack.c.l.b16 %v1466
    %v1560 = vunpack.c.h.b16 %v1466
    %v1561 = vunpack.c.l.b16 %v1467
    %v1562 = vunpack.c.h.b16 %v1467
    %v1563 = vunpack.c.l.b16 %v1468
    %v1564 = vunpack.c.h.b16 %v1468
    %v1565 = vpack.c.b16 %v1505, %v1501
    %v1566 = vpack.c.b16 %v1506, %v1502
    %v1567 = vpack.c.b16 %v1507, %v1503
    %v1568 = vpack.c.b16 %v1508, %v1504
    %v1569 = vpack.c.b16 %v1513, %v1509
    %v1570 = vpack.c.b16 %v1514, %v1510
    %v1571 = vpack.c.b16 %v1515, %v1511
    %v1572 = vpack.c.b16 %v1516, %v1512
    %v1573 = vpack.c.b16 %v1521, %v1517
    %v1574 = vpack.c.b16 %v1522, %v1518
    %v1575 = vpack.c.b16 %v1523, %v1519
    %v1576 = vpack.c.b16 %v1524, %v1520
    %v1577 = vpack.c.b16 %v1529, %v1525
    %v1578 = vpack.c.b16 %v1530, %v1526
    %v1579 = vpack.c.b16 %v1531, %v1527
    %v1580 = vpack.c.b16 %v1532, %v1528
    %v1581 = vpack.c.b16 %v1537, %v1533
    %v1582 = vpack.c.b16 %v1538, %v1534
    %v1583 = vpack.c.b16 %v1539, %v1535
    %v1584 = vpack.c.b16 %v1540, %v1536
    %v1585 = vpack.c.b16 %v1545, %v1541
    %v1586 = vpack.c.b16 %v1546, %v1542
    %v1587 = vpack.c.b16 %v1547, %v1543
    %v1588 = vpack.c.b16 %v1548, %v1544
    %v1589 = vpack.c.b16 %v1553, %v1549
    %v1590 = vpack.c.b16 %v1554, %v1550
    %v1591 = vpack.c.b16 %v1555, %v1551
    %v1592 = vpack.c.b16 %v1556, %v1552
    %v1593 = vpack.c.b16 %v1561, %v1557
    %v1594 = vpack.c.b16 %v1562, %v1558
    %v1595 = vpack.c.b16 %v1563, %v1559
    %v1596 = vpack.c.b16 %v1564, %v1560
    %1629 = vmatpush.bf16.msra.mxu0 %v1593
    %1630 = vmatpush.bf16.msra.mxu0 %v1589
    %1631 = vmatpush.bf16.msra.mxu0 %v1585
    %1632 = vmatpush.bf16.msra.mxu0 %v1581
    %1633 = vmatpush.bf16.msra.mxu0 %v1577
    %1634 = vmatpush.bf16.msra.mxu0 %v1573
    %1635 = vmatpush.bf16.msra.mxu0 %v1569
    %1636 = vmatpush.bf16.msra.mxu0 %v1565
    %1637 = vmatmul.bf16.gmra.mxu0 %v1436
    %v1638 = vpop.f32.mrf.mxu0
    %v1639 = vadd.f32 0.0, %v1638
    %v1640 = vpop.f32.mrf.mxu0
    %1641 = vdwg.mxu0
    %1642 = vmatpush.bf16.msra.mxu0 %v1594
    %1643 = vmatpush.bf16.msra.mxu0 %v1590
    %1644 = vmatpush.bf16.msra.mxu0 %v1586
    %1645 = vmatpush.bf16.msra.mxu0 %v1582
    %1646 = vmatpush.bf16.msra.mxu0 %v1578
    %1647 = vmatpush.bf16.msra.mxu0 %v1574
    %1648 = vmatpush.bf16.msra.mxu0 %v1570
    %1649 = vmatpush.bf16.msra.mxu0 %v1566
    %1650 = vmatmul.bf16.gmra.mxu0 %v1436
    %v1651 = vpop.f32.mrf.mxu0
    %v1652 = vadd.f32 0.0, %v1651
    %v1653 = vpop.f32.mrf.mxu0
    %1654 = vdwg.mxu0
    %1655 = vmatpush.bf16.msra.mxu0 %v1595
    %1656 = vmatpush.bf16.msra.mxu0 %v1591
    %1657 = vmatpush.bf16.msra.mxu0 %v1587
    %1658 = vmatpush.bf16.msra.mxu0 %v1583
    %1659 = vmatpush.bf16.msra.mxu0 %v1579
    %1660 = vmatpush.bf16.msra.mxu0 %v1575
    %1661 = vmatpush.bf16.msra.mxu0 %v1571
    %1662 = vmatpush.bf16.msra.mxu0 %v1567
    %1663 = vmatmul.bf16.gmra.mxu0 %v1436
    %v1664 = vpop.f32.mrf.mxu0
    %v1665 = vadd.f32 0.0, %v1664
    %v1666 = vpop.f32.mrf.mxu0
    %1667 = vdwg.mxu0
    %1668 = vmatpush.bf16.msra.mxu0 %v1596
    %1669 = vmatpush.bf16.msra.mxu0 %v1592
    %1670 = vmatpush.bf16.msra.mxu0 %v1588
    %1671 = vmatpush.bf16.msra.mxu0 %v1584
    %1672 = vmatpush.bf16.msra.mxu0 %v1580
    %1673 = vmatpush.bf16.msra.mxu0 %v1576
    %1674 = vmatpush.bf16.msra.mxu0 %v1572
    %1675 = vmatpush.bf16.msra.mxu0 %v1568
    %1676 = vmatmul.bf16.gmra.mxu0 %v1436
    %v1677 = vpop.f32.mrf.mxu0
    %v1678 = vadd.f32 0.0, %v1677
    %v1679 = vpop.f32.mrf.mxu0
    %1680 = vdwg.mxu0
    %v1681 = vadd.f32 %v1432, %v1639
    %v1682 = vadd.f32 %v1433, %v1652
    %v1683 = vadd.f32 %v1434, %v1665
    %v1684 = vadd.f32 %v1435, %v1678
    %v1685 = vxor.u32 %v1681, 2147483648
    %v1686 = vxor.u32 %v1682, 2147483648
    %v1687 = vxor.u32 %v1683, 2147483648
    %v1688 = vmul.f32 %v1685, 1.442695
    %v1689 = vpow.pop %v1688
    %v1690 = vmul.f32 %v1686, 1.442695
    %v1691 = vpow.pop %v1690
    %v1692 = vmul.f32 %v1687, 1.442695
    %v1693 = vpow.pop %v1692
    %v1694 = vadd.f32 %v1689, 1.0
    %v1695 = vadd.f32 %v1691, 1.0
    %v1696 = vadd.f32 %v1693, 1.0
    %v1697 = vrcp.pop %v1694
    %v1698 = vmul.f32 %v1694, %v1697
    %v1699 = vsub.f32 1.0, %v1698
    %v1700 = vmul.f32 %v1697, %v1699
    %v1701 = vadd.f32 %v1697, %v1700
    %vm1702 = vweird.f32 %v1694
    %vm1703 = vweird.f32 %v1697
    %vm1704 = vmor %vm1702, %vm1703
    %v1705 = vsel %vm1704, %v1697, %v1701
    %v1706 = vand.u32 2147483647, %v1694
    %vm1707 = vcmp.eq.f32.partialorder %v1706, 8.507059e+37
    %v1708 = vand.u32 %v1694, 2147483648
    %v1709 = vor.u32 1.1754944e-38, %v1708
    %v1710 = vsel %vm1707, %v1709, %v1705
    %v1711 = vmul.f32 1.0, %v1710
    %v1712 = vrcp.pop %v1695
    %v1713 = vmul.f32 %v1695, %v1712
    %v1714 = vsub.f32 1.0, %v1713
    %v1715 = vmul.f32 %v1712, %v1714
    %v1716 = vadd.f32 %v1712, %v1715
    %vm1717 = vweird.f32 %v1695
    %vm1718 = vweird.f32 %v1712
    %vm1719 = vmor %vm1717, %vm1718
    %v1720 = vsel %vm1719, %v1712, %v1716
    %v1721 = vand.u32 2147483647, %v1695
    %vm1722 = vcmp.eq.f32.partialorder %v1721, 8.507059e+37
    %v1723 = vand.u32 %v1695, 2147483648
    %v1724 = vor.u32 1.1754944e-38, %v1723
    %v1725 = vsel %vm1722, %v1724, %v1720
    %v1726 = vmul.f32 1.0, %v1725
    %v1727 = vrcp.pop %v1696
    %v1728 = vmul.f32 %v1696, %v1727
    %v1729 = vsub.f32 1.0, %v1728
    %v1730 = vmul.f32 %v1727, %v1729
    %v1731 = vadd.f32 %v1727, %v1730
    %vm1732 = vweird.f32 %v1696
    %vm1733 = vweird.f32 %v1727
    %vm1734 = vmor %vm1732, %vm1733
    %v1735 = vsel %vm1734, %v1727, %v1731
    %v1736 = vand.u32 2147483647, %v1696
    %vm1737 = vcmp.eq.f32.partialorder %v1736, 8.507059e+37
    %v1738 = vand.u32 %v1696, 2147483648
    %v1739 = vor.u32 1.1754944e-38, %v1738
    %v1740 = vsel %vm1737, %v1739, %v1735
    %v1741 = vmul.f32 1.0, %v1740
    %v1742 = vtanh.pop %v1684
    %v1743 = vmul.f32 %v1726, %v1428
    %v1744 = vmul.f32 %v1711, %v1742
    %v1745 = vadd.f32 %v1743, %v1744
    %v1746 = vtanh.pop %v1745
    %v1747 = vmul.f32 %v1741, %v1746
    %1748 = vst [vmem:[#allocation2 + $0x18] sm:$0xff] %v1747
    %v1749 = vld [vmem:[#allocation3 + $0x80] sm:$0xff]
    %v1750 = vld [vmem:[#allocation3 + $0x88] sm:$0xff]
    %v1751 = vld [vmem:[#allocation3 + $0x90] sm:$0xff]
    %v1752 = vld [vmem:[#allocation3 + $0x98] sm:$0xff]
    %v1753 = vpack.c.bf16 %v1747, %v1747
    %v1754 = vld [vmem:[#allocation4] sm:$0xff]
    %v1755 = vld [vmem:[#allocation4 + $0x8] sm:$0xff]
    %v1756 = vld [vmem:[#allocation4 + $0x10] sm:$0xff]
    %v1757 = vld [vmem:[#allocation4 + $0x18] sm:$0xff]
    %v1758 = vld [vmem:[#allocation4 + $0x20] sm:$0xff]
    %v1759 = vld [vmem:[#allocation4 + $0x28] sm:$0xff]
    %v1760 = vld [vmem:[#allocation4 + $0x30] sm:$0xff]
    %v1761 = vld [vmem:[#allocation4 + $0x38] sm:$0xff]
    %v1762 = vld [vmem:[#allocation4 + $0x40] sm:$0xff]
    %v1763 = vld [vmem:[#allocation4 + $0x48] sm:$0xff]
    %v1764 = vld [vmem:[#allocation4 + $0x50] sm:$0xff]
    %v1765 = vld [vmem:[#allocation4 + $0x58] sm:$0xff]
    %v1766 = vld [vmem:[#allocation4 + $0x60] sm:$0xff]
    %v1767 = vld [vmem:[#allocation4 + $0x68] sm:$0xff]
    %v1768 = vld [vmem:[#allocation4 + $0x70] sm:$0xff]
    %v1769 = vld [vmem:[#allocation4 + $0x78] sm:$0xff]
    %v1770 = vld [vmem:[#allocation4 + $0x80] sm:$0xff]
    %v1771 = vld [vmem:[#allocation4 + $0x88] sm:$0xff]
    %v1772 = vld [vmem:[#allocation4 + $0x90] sm:$0xff]
    %v1773 = vld [vmem:[#allocation4 + $0x98] sm:$0xff]
    %v1774 = vld [vmem:[#allocation4 + $0xa0] sm:$0xff]
    %v1775 = vld [vmem:[#allocation4 + $0xa8] sm:$0xff]
    %v1776 = vld [vmem:[#allocation4 + $0xb0] sm:$0xff]
    %v1777 = vld [vmem:[#allocation4 + $0xb8] sm:$0xff]
    %v1778 = vld [vmem:[#allocation4 + $0xc0] sm:$0xff]
    %v1779 = vld [vmem:[#allocation4 + $0xc8] sm:$0xff]
    %v1780 = vld [vmem:[#allocation4 + $0xd0] sm:$0xff]
    %v1781 = vld [vmem:[#allocation4 + $0xd8] sm:$0xff]
    %v1782 = vld [vmem:[#allocation4 + $0xe0] sm:$0xff]
    %v1783 = vld [vmem:[#allocation4 + $0xe8] sm:$0xff]
    %v1784 = vld [vmem:[#allocation4 + $0xf0] sm:$0xff]
    %v1785 = vld [vmem:[#allocation4 + $0xf8] sm:$0xff]
    %v1818 = vunpack.c.l.b16 %v1754
    %v1819 = vunpack.c.h.b16 %v1754
    %v1820 = vunpack.c.l.b16 %v1755
    %v1821 = vunpack.c.h.b16 %v1755
    %v1822 = vunpack.c.l.b16 %v1756
    %v1823 = vunpack.c.h.b16 %v1756
    %v1824 = vunpack.c.l.b16 %v1757
    %v1825 = vunpack.c.h.b16 %v1757
    %v1826 = vunpack.c.l.b16 %v1758
    %v1827 = vunpack.c.h.b16 %v1758
    %v1828 = vunpack.c.l.b16 %v1759
    %v1829 = vunpack.c.h.b16 %v1759
    %v1830 = vunpack.c.l.b16 %v1760
    %v1831 = vunpack.c.h.b16 %v1760
    %v1832 = vunpack.c.l.b16 %v1761
    %v1833 = vunpack.c.h.b16 %v1761
    %v1834 = vunpack.c.l.b16 %v1762
    %v1835 = vunpack.c.h.b16 %v1762
    %v1836 = vunpack.c.l.b16 %v1763
    %v1837 = vunpack.c.h.b16 %v1763
    %v1838 = vunpack.c.l.b16 %v1764
    %v1839 = vunpack.c.h.b16 %v1764
    %v1840 = vunpack.c.l.b16 %v1765
    %v1841 = vunpack.c.h.b16 %v1765
    %v1842 = vunpack.c.l.b16 %v1766
    %v1843 = vunpack.c.h.b16 %v1766
    %v1844 = vunpack.c.l.b16 %v1767
    %v1845 = vunpack.c.h.b16 %v1767
    %v1846 = vunpack.c.l.b16 %v1768
    %v1847 = vunpack.c.h.b16 %v1768
    %v1848 = vunpack.c.l.b16 %v1769
    %v1849 = vunpack.c.h.b16 %v1769
    %v1850 = vunpack.c.l.b16 %v1770
    %v1851 = vunpack.c.h.b16 %v1770
    %v1852 = vunpack.c.l.b16 %v1771
    %v1853 = vunpack.c.h.b16 %v1771
    %v1854 = vunpack.c.l.b16 %v1772
    %v1855 = vunpack.c.h.b16 %v1772
    %v1856 = vunpack.c.l.b16 %v1773
    %v1857 = vunpack.c.h.b16 %v1773
    %v1858 = vunpack.c.l.b16 %v1774
    %v1859 = vunpack.c.h.b16 %v1774
    %v1860 = vunpack.c.l.b16 %v1775
    %v1861 = vunpack.c.h.b16 %v1775
    %v1862 = vunpack.c.l.b16 %v1776
    %v1863 = vunpack.c.h.b16 %v1776
    %v1864 = vunpack.c.l.b16 %v1777
    %v1865 = vunpack.c.h.b16 %v1777
    %v1866 = vunpack.c.l.b16 %v1778
    %v1867 = vunpack.c.h.b16 %v1778
    %v1868 = vunpack.c.l.b16 %v1779
    %v1869 = vunpack.c.h.b16 %v1779
    %v1870 = vunpack.c.l.b16 %v1780
    %v1871 = vunpack.c.h.b16 %v1780
    %v1872 = vunpack.c.l.b16 %v1781
    %v1873 = vunpack.c.h.b16 %v1781
    %v1874 = vunpack.c.l.b16 %v1782
    %v1875 = vunpack.c.h.b16 %v1782
    %v1876 = vunpack.c.l.b16 %v1783
    %v1877 = vunpack.c.h.b16 %v1783
    %v1878 = vunpack.c.l.b16 %v1784
    %v1879 = vunpack.c.h.b16 %v1784
    %v1880 = vunpack.c.l.b16 %v1785
    %v1881 = vunpack.c.h.b16 %v1785
    %v1882 = vpack.c.b16 %v1822, %v1818
    %v1883 = vpack.c.b16 %v1823, %v1819
    %v1884 = vpack.c.b16 %v1824, %v1820
    %v1885 = vpack.c.b16 %v1825, %v1821
    %v1886 = vpack.c.b16 %v1830, %v1826
    %v1887 = vpack.c.b16 %v1831, %v1827
    %v1888 = vpack.c.b16 %v1832, %v1828
    %v1889 = vpack.c.b16 %v1833, %v1829
    %v1890 = vpack.c.b16 %v1838, %v1834
    %v1891 = vpack.c.b16 %v1839, %v1835
    %v1892 = vpack.c.b16 %v1840, %v1836
    %v1893 = vpack.c.b16 %v1841, %v1837
    %v1894 = vpack.c.b16 %v1846, %v1842
    %v1895 = vpack.c.b16 %v1847, %v1843
    %v1896 = vpack.c.b16 %v1848, %v1844
    %v1897 = vpack.c.b16 %v1849, %v1845
    %v1898 = vpack.c.b16 %v1854, %v1850
    %v1899 = vpack.c.b16 %v1855, %v1851
    %v1900 = vpack.c.b16 %v1856, %v1852
    %v1901 = vpack.c.b16 %v1857, %v1853
    %v1902 = vpack.c.b16 %v1862, %v1858
    %v1903 = vpack.c.b16 %v1863, %v1859
    %v1904 = vpack.c.b16 %v1864, %v1860
    %v1905 = vpack.c.b16 %v1865, %v1861
    %v1906 = vpack.c.b16 %v1870, %v1866
    %v1907 = vpack.c.b16 %v1871, %v1867
    %v1908 = vpack.c.b16 %v1872, %v1868
    %v1909 = vpack.c.b16 %v1873, %v1869
    %v1910 = vpack.c.b16 %v1878, %v1874
    %v1911 = vpack.c.b16 %v1879, %v1875
    %v1912 = vpack.c.b16 %v1880, %v1876
    %v1913 = vpack.c.b16 %v1881, %v1877
    %1946 = vmatpush.bf16.msra.mxu0 %v1910
    %1947 = vmatpush.bf16.msra.mxu0 %v1906
    %1948 = vmatpush.bf16.msra.mxu0 %v1902
    %1949 = vmatpush.bf16.msra.mxu0 %v1898
    %1950 = vmatpush.bf16.msra.mxu0 %v1894
    %1951 = vmatpush.bf16.msra.mxu0 %v1890
    %1952 = vmatpush.bf16.msra.mxu0 %v1886
    %1953 = vmatpush.bf16.msra.mxu0 %v1882
    %1954 = vmatmul.bf16.gmra.mxu0 %v1753
    %v1955 = vpop.f32.mrf.mxu0
    %v1956 = vadd.f32 0.0, %v1955
    %v1957 = vpop.f32.mrf.mxu0
    %1958 = vdwg.mxu0
    %1959 = vmatpush.bf16.msra.mxu0 %v1911
    %1960 = vmatpush.bf16.msra.mxu0 %v1907
    %1961 = vmatpush.bf16.msra.mxu0 %v1903
    %1962 = vmatpush.bf16.msra.mxu0 %v1899
    %1963 = vmatpush.bf16.msra.mxu0 %v1895
    %1964 = vmatpush.bf16.msra.mxu0 %v1891
    %1965 = vmatpush.bf16.msra.mxu0 %v1887
    %1966 = vmatpush.bf16.msra.mxu0 %v1883
    %1967 = vmatmul.bf16.gmra.mxu0 %v1753
    %v1968 = vpop.f32.mrf.mxu0
    %v1969 = vadd.f32 0.0, %v1968
    %v1970 = vpop.f32.mrf.mxu0
    %1971 = vdwg.mxu0
    %1972 = vmatpush.bf16.msra.mxu0 %v1912
    %1973 = vmatpush.bf16.msra.mxu0 %v1908
    %1974 = vmatpush.bf16.msra.mxu0 %v1904
    %1975 = vmatpush.bf16.msra.mxu0 %v1900
    %1976 = vmatpush.bf16.msra.mxu0 %v1896
    %1977 = vmatpush.bf16.msra.mxu0 %v1892
    %1978 = vmatpush.bf16.msra.mxu0 %v1888
    %1979 = vmatpush.bf16.msra.mxu0 %v1884
    %1980 = vmatmul.bf16.gmra.mxu0 %v1753
    %v1981 = vpop.f32.mrf.mxu0
    %v1982 = vadd.f32 0.0, %v1981
    %v1983 = vpop.f32.mrf.mxu0
    %1984 = vdwg.mxu0
    %1985 = vmatpush.bf16.msra.mxu0 %v1913
    %1986 = vmatpush.bf16.msra.mxu0 %v1909
    %1987 = vmatpush.bf16.msra.mxu0 %v1905
    %1988 = vmatpush.bf16.msra.mxu0 %v1901
    %1989 = vmatpush.bf16.msra.mxu0 %v1897
    %1990 = vmatpush.bf16.msra.mxu0 %v1893
    %1991 = vmatpush.bf16.msra.mxu0 %v1889
    %1992 = vmatpush.bf16.msra.mxu0 %v1885
    %1993 = vmatmul.bf16.gmra.mxu0 %v1753
    %v1994 = vpop.f32.mrf.mxu0
    %v1995 = vadd.f32 0.0, %v1994
    %v1996 = vpop.f32.mrf.mxu0
    %1997 = vdwg.mxu0
    %v1998 = vadd.f32 %v1749, %v1956
    %v1999 = vadd.f32 %v1750, %v1969
    %v2000 = vadd.f32 %v1751, %v1982
    %v2001 = vadd.f32 %v1752, %v1995
    %v2002 = vxor.u32 %v1998, 2147483648
    %v2003 = vxor.u32 %v1999, 2147483648
    %v2004 = vxor.u32 %v2000, 2147483648
    %v2005 = vmul.f32 %v2002, 1.442695
    %v2006 = vpow.pop %v2005
    %v2007 = vmul.f32 %v2003, 1.442695
    %v2008 = vpow.pop %v2007
    %v2009 = vmul.f32 %v2004, 1.442695
    %v2010 = vpow.pop %v2009
    %v2011 = vadd.f32 %v2006, 1.0
    %v2012 = vadd.f32 %v2008, 1.0
    %v2013 = vadd.f32 %v2010, 1.0
    %v2014 = vrcp.pop %v2011
    %v2015 = vmul.f32 %v2011, %v2014
    %v2016 = vsub.f32 1.0, %v2015
    %v2017 = vmul.f32 %v2014, %v2016
    %v2018 = vadd.f32 %v2014, %v2017
    %vm2019 = vweird.f32 %v2011
    %vm2020 = vweird.f32 %v2014
    %vm2021 = vmor %vm2019, %vm2020
    %v2022 = vsel %vm2021, %v2014, %v2018
    %v2023 = vand.u32 2147483647, %v2011
    %vm2024 = vcmp.eq.f32.partialorder %v2023, 8.507059e+37
    %v2025 = vand.u32 %v2011, 2147483648
    %v2026 = vor.u32 1.1754944e-38, %v2025
    %v2027 = vsel %vm2024, %v2026, %v2022
    %v2028 = vmul.f32 1.0, %v2027
    %v2029 = vrcp.pop %v2012
    %v2030 = vmul.f32 %v2012, %v2029
    %v2031 = vsub.f32 1.0, %v2030
    %v2032 = vmul.f32 %v2029, %v2031
    %v2033 = vadd.f32 %v2029, %v2032
    %vm2034 = vweird.f32 %v2012
    %vm2035 = vweird.f32 %v2029
    %vm2036 = vmor %vm2034, %vm2035
    %v2037 = vsel %vm2036, %v2029, %v2033
    %v2038 = vand.u32 2147483647, %v2012
    %vm2039 = vcmp.eq.f32.partialorder %v2038, 8.507059e+37
    %v2040 = vand.u32 %v2012, 2147483648
    %v2041 = vor.u32 1.1754944e-38, %v2040
    %v2042 = vsel %vm2039, %v2041, %v2037
    %v2043 = vmul.f32 1.0, %v2042
    %v2044 = vrcp.pop %v2013
    %v2045 = vmul.f32 %v2013, %v2044
    %v2046 = vsub.f32 1.0, %v2045
    %v2047 = vmul.f32 %v2044, %v2046
    %v2048 = vadd.f32 %v2044, %v2047
    %vm2049 = vweird.f32 %v2013
    %vm2050 = vweird.f32 %v2044
    %vm2051 = vmor %vm2049, %vm2050
    %v2052 = vsel %vm2051, %v2044, %v2048
    %v2053 = vand.u32 2147483647, %v2013
    %vm2054 = vcmp.eq.f32.partialorder %v2053, 8.507059e+37
    %v2055 = vand.u32 %v2013, 2147483648
    %v2056 = vor.u32 1.1754944e-38, %v2055
    %v2057 = vsel %vm2054, %v2056, %v2052
    %v2058 = vmul.f32 1.0, %v2057
    %v2059 = vtanh.pop %v2001
    %v2060 = vmul.f32 %v2043, %v1745
    %v2061 = vmul.f32 %v2028, %v2059
    %v2062 = vadd.f32 %v2060, %v2061
    %v2063 = vtanh.pop %v2062
    %v2064 = vmul.f32 %v2058, %v2063
    %2065 = vst [vmem:[#allocation2 + $0x20] sm:$0xff] %v2064
    %v2066 = vld [vmem:[#allocation3 + $0xa0] sm:$0xff]
    %v2067 = vld [vmem:[#allocation3 + $0xa8] sm:$0xff]
    %v2068 = vld [vmem:[#allocation3 + $0xb0] sm:$0xff]
    %v2069 = vld [vmem:[#allocation3 + $0xb8] sm:$0xff]
    %v2070 = vpack.c.bf16 %v2064, %v2064
    %v2071 = vld [vmem:[#allocation4] sm:$0xff]
    %v2072 = vld [vmem:[#allocation4 + $0x8] sm:$0xff]
    %v2073 = vld [vmem:[#allocation4 + $0x10] sm:$0xff]
    %v2074 = vld [vmem:[#allocation4 + $0x18] sm:$0xff]
    %v2075 = vld [vmem:[#allocation4 + $0x20] sm:$0xff]
    %v2076 = vld [vmem:[#allocation4 + $0x28] sm:$0xff]
    %v2077 = vld [vmem:[#allocation4 + $0x30] sm:$0xff]
    %v2078 = vld [vmem:[#allocation4 + $0x38] sm:$0xff]
    %v2079 = vld [vmem:[#allocation4 + $0x40] sm:$0xff]
    %v2080 = vld [vmem:[#allocation4 + $0x48] sm:$0xff]
    %v2081 = vld [vmem:[#allocation4 + $0x50] sm:$0xff]
    %v2082 = vld [vmem:[#allocation4 + $0x58] sm:$0xff]
    %v2083 = vld [vmem:[#allocation4 + $0x60] sm:$0xff]
    %v2084 = vld [vmem:[#allocation4 + $0x68] sm:$0xff]
    %v2085 = vld [vmem:[#allocation4 + $0x70] sm:$0xff]
    %v2086 = vld [vmem:[#allocation4 + $0x78] sm:$0xff]
    %v2087 = vld [vmem:[#allocation4 + $0x80] sm:$0xff]
    %v2088 = vld [vmem:[#allocation4 + $0x88] sm:$0xff]
    %v2089 = vld [vmem:[#allocation4 + $0x90] sm:$0xff]
    %v2090 = vld [vmem:[#allocation4 + $0x98] sm:$0xff]
    %v2091 = vld [vmem:[#allocation4 + $0xa0] sm:$0xff]
    %v2092 = vld [vmem:[#allocation4 + $0xa8] sm:$0xff]
    %v2093 = vld [vmem:[#allocation4 + $0xb0] sm:$0xff]
    %v2094 = vld [vmem:[#allocation4 + $0xb8] sm:$0xff]
    %v2095 = vld [vmem:[#allocation4 + $0xc0] sm:$0xff]
    %v2096 = vld [vmem:[#allocation4 + $0xc8] sm:$0xff]
    %v2097 = vld [vmem:[#allocation4 + $0xd0] sm:$0xff]
    %v2098 = vld [vmem:[#allocation4 + $0xd8] sm:$0xff]
    %v2099 = vld [vmem:[#allocation4 + $0xe0] sm:$0xff]
    %v2100 = vld [vmem:[#allocation4 + $0xe8] sm:$0xff]
    %v2101 = vld [vmem:[#allocation4 + $0xf0] sm:$0xff]
    %v2102 = vld [vmem:[#allocation4 + $0xf8] sm:$0xff]
    %v2135 = vunpack.c.l.b16 %v2071
    %v2136 = vunpack.c.h.b16 %v2071
    %v2137 = vunpack.c.l.b16 %v2072
    %v2138 = vunpack.c.h.b16 %v2072
    %v2139 = vunpack.c.l.b16 %v2073
    %v2140 = vunpack.c.h.b16 %v2073
    %v2141 = vunpack.c.l.b16 %v2074
    %v2142 = vunpack.c.h.b16 %v2074
    %v2143 = vunpack.c.l.b16 %v2075
    %v2144 = vunpack.c.h.b16 %v2075
    %v2145 = vunpack.c.l.b16 %v2076
    %v2146 = vunpack.c.h.b16 %v2076
    %v2147 = vunpack.c.l.b16 %v2077
    %v2148 = vunpack.c.h.b16 %v2077
    %v2149 = vunpack.c.l.b16 %v2078
    %v2150 = vunpack.c.h.b16 %v2078
    %v2151 = vunpack.c.l.b16 %v2079
    %v2152 = vunpack.c.h.b16 %v2079
    %v2153 = vunpack.c.l.b16 %v2080
    %v2154 = vunpack.c.h.b16 %v2080
    %v2155 = vunpack.c.l.b16 %v2081
    %v2156 = vunpack.c.h.b16 %v2081
    %v2157 = vunpack.c.l.b16 %v2082
    %v2158 = vunpack.c.h.b16 %v2082
    %v2159 = vunpack.c.l.b16 %v2083
    %v2160 = vunpack.c.h.b16 %v2083
    %v2161 = vunpack.c.l.b16 %v2084
    %v2162 = vunpack.c.h.b16 %v2084
    %v2163 = vunpack.c.l.b16 %v2085
    %v2164 = vunpack.c.h.b16 %v2085
    %v2165 = vunpack.c.l.b16 %v2086
    %v2166 = vunpack.c.h.b16 %v2086
    %v2167 = vunpack.c.l.b16 %v2087
    %v2168 = vunpack.c.h.b16 %v2087
    %v2169 = vunpack.c.l.b16 %v2088
    %v2170 = vunpack.c.h.b16 %v2088
    %v2171 = vunpack.c.l.b16 %v2089
    %v2172 = vunpack.c.h.b16 %v2089
    %v2173 = vunpack.c.l.b16 %v2090
    %v2174 = vunpack.c.h.b16 %v2090
    %v2175 = vunpack.c.l.b16 %v2091
    %v2176 = vunpack.c.h.b16 %v2091
    %v2177 = vunpack.c.l.b16 %v2092
    %v2178 = vunpack.c.h.b16 %v2092
    %v2179 = vunpack.c.l.b16 %v2093
    %v2180 = vunpack.c.h.b16 %v2093
    %v2181 = vunpack.c.l.b16 %v2094
    %v2182 = vunpack.c.h.b16 %v2094
    %v2183 = vunpack.c.l.b16 %v2095
    %v2184 = vunpack.c.h.b16 %v2095
    %v2185 = vunpack.c.l.b16 %v2096
    %v2186 = vunpack.c.h.b16 %v2096
    %v2187 = vunpack.c.l.b16 %v2097
    %v2188 = vunpack.c.h.b16 %v2097
    %v2189 = vunpack.c.l.b16 %v2098
    %v2190 = vunpack.c.h.b16 %v2098
    %v2191 = vunpack.c.l.b16 %v2099
    %v2192 = vunpack.c.h.b16 %v2099
    %v2193 = vunpack.c.l.b16 %v2100
    %v2194 = vunpack.c.h.b16 %v2100
    %v2195 = vunpack.c.l.b16 %v2101
    %v2196 = vunpack.c.h.b16 %v2101
    %v2197 = vunpack.c.l.b16 %v2102
    %v2198 = vunpack.c.h.b16 %v2102
    %v2199 = vpack.c.b16 %v2139, %v2135
    %v2200 = vpack.c.b16 %v2140, %v2136
    %v2201 = vpack.c.b16 %v2141, %v2137
    %v2202 = vpack.c.b16 %v2142, %v2138
    %v2203 = vpack.c.b16 %v2147, %v2143
    %v2204 = vpack.c.b16 %v2148, %v2144
    %v2205 = vpack.c.b16 %v2149, %v2145
    %v2206 = vpack.c.b16 %v2150, %v2146
    %v2207 = vpack.c.b16 %v2155, %v2151
    %v2208 = vpack.c.b16 %v2156, %v2152
    %v2209 = vpack.c.b16 %v2157, %v2153
    %v2210 = vpack.c.b16 %v2158, %v2154
    %v2211 = vpack.c.b16 %v2163, %v2159
    %v2212 = vpack.c.b16 %v2164, %v2160
    %v2213 = vpack.c.b16 %v2165, %v2161
    %v2214 = vpack.c.b16 %v2166, %v2162
    %v2215 = vpack.c.b16 %v2171, %v2167
    %v2216 = vpack.c.b16 %v2172, %v2168
    %v2217 = vpack.c.b16 %v2173, %v2169
    %v2218 = vpack.c.b16 %v2174, %v2170
    %v2219 = vpack.c.b16 %v2179, %v2175
    %v2220 = vpack.c.b16 %v2180, %v2176
    %v2221 = vpack.c.b16 %v2181, %v2177
    %v2222 = vpack.c.b16 %v2182, %v2178
    %v2223 = vpack.c.b16 %v2187, %v2183
    %v2224 = vpack.c.b16 %v2188, %v2184
    %v2225 = vpack.c.b16 %v2189, %v2185
    %v2226 = vpack.c.b16 %v2190, %v2186
    %v2227 = vpack.c.b16 %v2195, %v2191
    %v2228 = vpack.c.b16 %v2196, %v2192
    %v2229 = vpack.c.b16 %v2197, %v2193
    %v2230 = vpack.c.b16 %v2198, %v2194
    %2263 = vmatpush.bf16.msra.mxu0 %v2227
    %2264 = vmatpush.bf16.msra.mxu0 %v2223
    %2265 = vmatpush.bf16.msra.mxu0 %v2219
    %2266 = vmatpush.bf16.msra.mxu0 %v2215
    %2267 = vmatpush.bf16.msra.mxu0 %v2211
    %2268 = vmatpush.bf16.msra.mxu0 %v2207
    %2269 = vmatpush.bf16.msra.mxu0 %v2203
    %2270 = vmatpush.bf16.msra.mxu0 %v2199
    %2271 = vmatmul.bf16.gmra.mxu0 %v2070
    %v2272 = vpop.f32.mrf.mxu0
    %v2273 = vadd.f32 0.0, %v2272
    %v2274 = vpop.f32.mrf.mxu0
    %2275 = vdwg.mxu0
    %2276 = vmatpush.bf16.msra.mxu0 %v2228
    %2277 = vmatpush.bf16.msra.mxu0 %v2224
    %2278 = vmatpush.bf16.msra.mxu0 %v2220
    %2279 = vmatpush.bf16.msra.mxu0 %v2216
    %2280 = vmatpush.bf16.msra.mxu0 %v2212
    %2281 = vmatpush.bf16.msra.mxu0 %v2208
    %2282 = vmatpush.bf16.msra.mxu0 %v2204
    %2283 = vmatpush.bf16.msra.mxu0 %v2200
    %2284 = vmatmul.bf16.gmra.mxu0 %v2070
    %v2285 = vpop.f32.mrf.mxu0
    %v2286 = vadd.f32 0.0, %v2285
    %v2287 = vpop.f32.mrf.mxu0
    %2288 = vdwg.mxu0
    %2289 = vmatpush.bf16.msra.mxu0 %v2229
    %2290 = vmatpush.bf16.msra.mxu0 %v2225
    %2291 = vmatpush.bf16.msra.mxu0 %v2221
    %2292 = vmatpush.bf16.msra.mxu0 %v2217
    %2293 = vmatpush.bf16.msra.mxu0 %v2213
    %2294 = vmatpush.bf16.msra.mxu0 %v2209
    %2295 = vmatpush.bf16.msra.mxu0 %v2205
    %2296 = vmatpush.bf16.msra.mxu0 %v2201
    %2297 = vmatmul.bf16.gmra.mxu0 %v2070
    %v2298 = vpop.f32.mrf.mxu0
    %v2299 = vadd.f32 0.0, %v2298
    %v2300 = vpop.f32.mrf.mxu0
    %2301 = vdwg.mxu0
    %2302 = vmatpush.bf16.msra.mxu0 %v2230
    %2303 = vmatpush.bf16.msra.mxu0 %v2226
    %2304 = vmatpush.bf16.msra.mxu0 %v2222
    %2305 = vmatpush.bf16.msra.mxu0 %v2218
    %2306 = vmatpush.bf16.msra.mxu0 %v2214
    %2307 = vmatpush.bf16.msra.mxu0 %v2210
    %2308 = vmatpush.bf16.msra.mxu0 %v2206
    %2309 = vmatpush.bf16.msra.mxu0 %v2202
    %2310 = vmatmul.bf16.gmra.mxu0 %v2070
    %v2311 = vpop.f32.mrf.mxu0
    %v2312 = vadd.f32 0.0, %v2311
    %v2313 = vpop.f32.mrf.mxu0
    %2314 = vdwg.mxu0
    %v2315 = vadd.f32 %v2066, %v2273
    %v2316 = vadd.f32 %v2067, %v2286
    %v2317 = vadd.f32 %v2068, %v2299
    %v2318 = vadd.f32 %v2069, %v2312
    %v2319 = vxor.u32 %v2315, 2147483648
    %v2320 = vxor.u32 %v2316, 2147483648
    %v2321 = vxor.u32 %v2317, 2147483648
    %v2322 = vmul.f32 %v2319, 1.442695
    %v2323 = vpow.pop %v2322
    %v2324 = vmul.f32 %v2320, 1.442695
    %v2325 = vpow.pop %v2324
    %v2326 = vmul.f32 %v2321, 1.442695
    %v2327 = vpow.pop %v2326
    %v2328 = vadd.f32 %v2323, 1.0
    %v2329 = vadd.f32 %v2325, 1.0
    %v2330 = vadd.f32 %v2327, 1.0
    %v2331 = vrcp.pop %v2328
    %v2332 = vmul.f32 %v2328, %v2331
    %v2333 = vsub.f32 1.0, %v2332
    %v2334 = vmul.f32 %v2331, %v2333
    %v2335 = vadd.f32 %v2331, %v2334
    %vm2336 = vweird.f32 %v2328
    %vm2337 = vweird.f32 %v2331
    %vm2338 = vmor %vm2336, %vm2337
    %v2339 = vsel %vm2338, %v2331, %v2335
    %v2340 = vand.u32 2147483647, %v2328
    %vm2341 = vcmp.eq.f32.partialorder %v2340, 8.507059e+37
    %v2342 = vand.u32 %v2328, 2147483648
    %v2343 = vor.u32 1.1754944e-38, %v2342
    %v2344 = vsel %vm2341, %v2343, %v2339
    %v2345 = vmul.f32 1.0, %v2344
    %v2346 = vrcp.pop %v2329
    %v2347 = vmul.f32 %v2329, %v2346
    %v2348 = vsub.f32 1.0, %v2347
    %v2349 = vmul.f32 %v2346, %v2348
    %v2350 = vadd.f32 %v2346, %v2349
    %vm2351 = vweird.f32 %v2329
    %vm2352 = vweird.f32 %v2346
    %vm2353 = vmor %vm2351, %vm2352
    %v2354 = vsel %vm2353, %v2346, %v2350
    %v2355 = vand.u32 2147483647, %v2329
    %vm2356 = vcmp.eq.f32.partialorder %v2355, 8.507059e+37
    %v2357 = vand.u32 %v2329, 2147483648
    %v2358 = vor.u32 1.1754944e-38, %v2357
    %v2359 = vsel %vm2356, %v2358, %v2354
    %v2360 = vmul.f32 1.0, %v2359
    %v2361 = vrcp.pop %v2330
    %v2362 = vmul.f32 %v2330, %v2361
    %v2363 = vsub.f32 1.0, %v2362
    %v2364 = vmul.f32 %v2361, %v2363
    %v2365 = vadd.f32 %v2361, %v2364
    %vm2366 = vweird.f32 %v2330
    %vm2367 = vweird.f32 %v2361
    %vm2368 = vmor %vm2366, %vm2367
    %v2369 = vsel %vm2368, %v2361, %v2365
    %v2370 = vand.u32 2147483647, %v2330
    %vm2371 = vcmp.eq.f32.partialorder %v2370, 8.507059e+37
    %v2372 = vand.u32 %v2330, 2147483648
    %v2373 = vor.u32 1.1754944e-38, %v2372
    %v2374 = vsel %vm2371, %v2373, %v2369
    %v2375 = vmul.f32 1.0, %v2374
    %v2376 = vtanh.pop %v2318
    %v2377 = vmul.f32 %v2360, %v2062
    %v2378 = vmul.f32 %v2345, %v2376
    %v2379 = vadd.f32 %v2377, %v2378
    %v2380 = vtanh.pop %v2379
    %v2381 = vmul.f32 %v2375, %v2380
    %2382 = vst [vmem:[#allocation2 + $0x28] sm:$0xff] %v2381
    %2383 = vst [vmem:[#allocation17] sm:$0xff] %v2381
    %2384 = vst [vmem:[#allocation19] sm:$0xff] %v2379
    %s2385 = smul.u32 %s475, 1
    %s2386 = sshll.u32 %s2385, 4
    %2387 = dma.done %s115, %s2386
    %v2388 = vld [vmem:[#allocation2] sm:$0xff]
    %v2389 = vld [vmem:[#allocation2 + $0x8] sm:$0xff]
    %v2390 = vld [vmem:[#allocation2 + $0x10] sm:$0xff]
    %v2391 = vld [vmem:[#allocation2 + $0x18] sm:$0xff]
    %v2392 = vld [vmem:[#allocation2 + $0x20] sm:$0xff]
    %v2393 = vld [vmem:[#allocation2 + $0x28] sm:$0xff]
    %v2394 = vpack.c.bf16 %v2389, %v2388
    %v2395 = vpack.c.bf16 %v2391, %v2390
    %v2396 = vpack.c.bf16 %v2393, %v2392
    %v2397 = vld [vmem:[#allocation5] sm:$0xf]
    %v2398 = vld [vmem:[#allocation5 + $0x4] sm:$0xf]
    %v2399 = vld [vmem:[#allocation5 + $0x8] sm:$0xf]
    %v2400 = vld [vmem:[#allocation5 + $0xc] sm:$0xf]
    %v2401 = vld [vmem:[#allocation5 + $0x10] sm:$0xf]
    %v2402 = vld [vmem:[#allocation5 + $0x14] sm:$0xf]
    %v2403 = vld [vmem:[#allocation5 + $0x18] sm:$0xf]
    %v2404 = vld [vmem:[#allocation5 + $0x1c] sm:$0xf]
    %v2405 = vld [vmem:[#allocation5 + $0x20] sm:$0xf]
    %v2406 = vld [vmem:[#allocation5 + $0x24] sm:$0xf]
    %v2407 = vld [vmem:[#allocation5 + $0x28] sm:$0xf]
    %v2408 = vld [vmem:[#allocation5 + $0x2c] sm:$0xf]
    %v2409 = vld [vmem:[#allocation5 + $0x30] sm:$0xf]
    %v2410 = vld [vmem:[#allocation5 + $0x34] sm:$0xf]
    %v2411 = vld [vmem:[#allocation5 + $0x38] sm:$0xf]
    %v2412 = vld [vmem:[#allocation5 + $0x3c] sm:$0xf]
    %v2413 = vld [vmem:[%s3] sm:$0x1]
    %v2415 = vperm.slane %v2413, 0
    %v2433 = vunpack.c.l.b16 %v2397
    %v2434 = vunpack.c.l.b16 %v2398
    %v2435 = vunpack.c.l.b16 %v2399
    %v2436 = vunpack.c.l.b16 %v2400
    %v2437 = vunpack.c.l.b16 %v2401
    %v2438 = vunpack.c.l.b16 %v2402
    %v2439 = vunpack.c.l.b16 %v2403
    %v2440 = vunpack.c.l.b16 %v2404
    %v2441 = vunpack.c.l.b16 %v2405
    %v2442 = vunpack.c.l.b16 %v2406
    %v2443 = vunpack.c.l.b16 %v2407
    %v2444 = vunpack.c.l.b16 %v2408
    %v2445 = vunpack.c.l.b16 %v2409
    %v2446 = vunpack.c.l.b16 %v2410
    %v2447 = vunpack.c.l.b16 %v2411
    %v2448 = vunpack.c.l.b16 %v2412
    %v2449 = vpack.c.b16 %v2434, %v2433
    %v2450 = vpack.c.b16 %v2436, %v2435
    %v2451 = vpack.c.b16 %v2438, %v2437
    %v2452 = vpack.c.b16 %v2440, %v2439
    %v2453 = vpack.c.b16 %v2442, %v2441
    %v2454 = vpack.c.b16 %v2444, %v2443
    %v2455 = vpack.c.b16 %v2446, %v2445
    %v2456 = vpack.c.b16 %v2448, %v2447
    %2465 = vmatpush.bf16.msra.mxu0 %v2456
    %2466 = vmatpush.bf16.msra.mxu0 %v2455
    %2467 = vmatpush.bf16.msra.mxu0 %v2454
    %2468 = vmatpush.bf16.msra.mxu0 %v2453
    %2469 = vmatpush.bf16.msra.mxu0 %v2452
    %2470 = vmatpush.bf16.msra.mxu0 %v2451
    %2471 = vmatpush.bf16.msra.mxu0 %v2450
    %2472 = vmatpush.bf16.msra.mxu0 %v2449
    %2473 = vmatmul.bf16.gmra.mxu0 %v2394
    %v2474 = vpop.f32.mrf.mxu0
    %v2475 = vadd.f32 %v2415, %v2474
    %v2476 = vpop.f32.mrf.mxu0
    %v2477 = vadd.f32 %v2415, %v2476
    %2478 = vmatmul.bf16.gmra.mxu0 %v2395
    %v2479 = vpop.f32.mrf.mxu0
    %v2480 = vadd.f32 %v2415, %v2479
    %v2481 = vpop.f32.mrf.mxu0
    %v2482 = vadd.f32 %v2415, %v2481
    %2483 = vmatmul.bf16.gmra.mxu0 %v2396
    %v2484 = vpop.f32.mrf.mxu0
    %v2485 = vadd.f32 %v2415, %v2484
    %v2486 = vpop.f32.mrf.mxu0
    %v2487 = vadd.f32 %v2415, %v2486
    %2488 = vdwg.mxu0
    %2489 = vst [vmem:[#allocation16] sm:$0xff] %v2475
    %2490 = vst [vmem:[#allocation16 + $0x8] sm:$0xff] %v2477
    %2491 = vst [vmem:[#allocation16 + $0x10] sm:$0xff] %v2480
    %2492 = vst [vmem:[#allocation16 + $0x18] sm:$0xff] %v2482
    %2493 = vst [vmem:[#allocation16 + $0x20] sm:$0xff] %v2485
    %2494 = vst [vmem:[#allocation16 + $0x28] sm:$0xff] %v2487
    // Predicated region
    $region54: #{tpu_custom_call.1} parent=1 // pred_check
      _
    $region55: #{tpu_custom_call.1} parent=1 // pred_check_branch
      %2496 = sbr.rel (0) target = $region57
    $region56: #{tpu_custom_call.1} parent=1 // pred_region
      %2498 = vsyncadd [#allocation9], 0
      %s2499 = sshll.u32 [#allocation16], 4
      %s2500 = int_to_ptr.vmem [resolvable:$true] %s2499
      %s2501 = sshll.u32 %s8, 4
      %s2502 = int_to_ptr.hbm [resolvable:$true] %s2501
      %2507 = dma.vmem_to_hbm [thread:$0]  %s2500, 768, %s2502, [#allocation9], 128, 128, 8
    $region57: #{tpu_custom_call.1} parent=1 // pred_fallthru
      _
    // Predicated region
    $region58: #{tpu_custom_call.1} parent=1 // pred_check
      _
    $region59: #{tpu_custom_call.1} parent=1 // pred_check_branch
      %2509 = sbr.rel (0) target = $region61
    $region60: #{tpu_custom_call.1} parent=1 // pred_region
      %2511 = vsyncadd [#allocation18], 0
      %s2513 = sshll.u32 [#allocation17], 4
      %s2514 = int_to_ptr.vmem [resolvable:$true] %s2513
      %s2515 = sshll.u32 %s9, 4
      %s2516 = int_to_ptr.hbm [resolvable:$true] %s2515
      %2518 = dma.vmem_to_hbm [thread:$0]  %s2514, 128, %s2516, [#allocation18]
    $region61: #{tpu_custom_call.1} parent=1 // pred_fallthru
      _
    // Predicated region
    $region62: #{tpu_custom_call.1} parent=1 // pred_check
      _
    $region63: #{tpu_custom_call.1} parent=1 // pred_check_branch
      %2520 = sbr.rel (0) target = $region65
    $region64: #{tpu_custom_call.1} parent=1 // pred_region
      %2522 = vsyncadd [#allocation18], 0
      %s2524 = sshll.u32 [#allocation19], 4
      %s2525 = int_to_ptr.vmem [resolvable:$true] %s2524
      %s2526 = sshll.u32 %s10, 4
      %s2527 = int_to_ptr.hbm [resolvable:$true] %s2526
      %2529 = dma.vmem_to_hbm [thread:$0]  %s2525, 128, %s2527, [#allocation18]
    $region65: #{tpu_custom_call.1} parent=1 // pred_fallthru
      _
    // Predicated region
    $region66: #{tpu_custom_call.1} parent=1 // pred_check
      _
    $region67: #{tpu_custom_call.1} parent=1 // pred_check_branch
      %2531 = sbr.rel (0) target = $region69
    $region68: #{tpu_custom_call.1} parent=1 // pred_region
      %2533 = dma.done [#allocation9], 768
    $region69: #{tpu_custom_call.1} parent=1 // pred_fallthru
      _
    // Predicated region
    $region70: #{tpu_custom_call.1} parent=1 // pred_check
      _
    $region71: #{tpu_custom_call.1} parent=1 // pred_check_branch
      %2535 = sbr.rel (0) target = $region73
    $region72: #{tpu_custom_call.1} parent=1 // pred_region
      %2537 = dma.done [#allocation18], 128
    $region73: #{tpu_custom_call.1} parent=1 // pred_fallthru
      _
    // Predicated region
    $region74: #{tpu_custom_call.1} parent=1 // pred_check
      _
    $region75: #{tpu_custom_call.1} parent=1 // pred_check_branch
      %2539 = sbr.rel (0) target = $region77
    $region76: #{tpu_custom_call.1} parent=1 // pred_region
      %2541 = dma.done [#allocation18], 128
    $region77: #{tpu_custom_call.1} parent=1 // pred_fallthru
      _
    %2542 = vsyncpa [#allocation8], 1
    %2543 = vsyncpa [#allocation11], 1
    %2544 = vsyncpa [#allocation14], 1
    %2545 = vsyncpa [#allocation9], 1
    %2546 = vsyncpa [#allocation18], 1
  %2547 = vsyncmov [#allocation6]
  %s2548 = vpop.sfrf %2547
  %p2549 = scmp.eq.s32.totalorder %s2548, 0
  %p2550 = pneg %p2549
  %2552 = shalt.err (%p2550)
  %s2553 = scalar_lea.sflag [#allocation6], 1
  %2554 = vsyncmov %s2553
  %s2555 = vpop.sfrf %2554
  %p2556 = scmp.eq.s32.totalorder %s2555, 0
  %p2557 = pneg %p2556
  %2559 = shalt.err (%p2557)

</llo_original>
